<compile_context>
chip_gen: v6e
topology: v6e:2x2x1
jax: 0.10.0
libtpu: 0.0.40
codegen_flags: <defaults>
</compile_context>

<pallas_src>
import jax
import jax.numpy as jnp
from jax.experimental import pallas as pl
from jax.experimental.pallas import tpu as pltpu


def _vmem_limit_bytes():
    """VMEM limit: generous on 128-MiB chips (v5e/v6e), tighter on v7x (64 MiB)."""
    try:
        kind = jax.devices()[0].device_kind.lower()
    except Exception:
        kind = ""
    if "7" in kind:               # TPU7x / v7x: 64 MiB physical VMEM per TensorCore
        return 48 * 1024 * 1024
    return 100 * 1024 * 1024      # v5e / v6e: 128 MiB physical VMEM


def _pick_tile(n, candidates):
    """Largest candidate that divides n (candidates are multiples of 128), else n."""
    for c in candidates:
        if n % c == 0:
            return c
    return n


def _pick_tq(C, C4, N, budget_bytes):
    """Largest query tile whose per-step VMEM residency fits the budget."""
    if N % 128 != 0:
        # TODO(synk): pad N up to a multiple of 128 and mask padded keys/queries;
        # non-128 N currently falls back to a single untiled query block.
        return N
    base = (
        2 * C * N * 4            # x input block, double-buffered, f32
        + 2 * C * N * 2          # t output block, double-buffered, bf16
        + C4 * N * 2             # xk scratch (bf16)
        + C * N * 2              # xv scratch (bf16)
        + C * N * 4              # xv @ attn accumulator (f32)
        + N * 4                  # attention column-sum (f32)
        + (2 * C * C + C4 * C) * 2  # weights (bf16), double-buffer ignored (small)
    )
    for tq in (2048, 1024, 512, 256, 128):
        if N % tq == 0 and base + tq * N * 14 <= budget_bytes:
            return tq
    return 128


def _make_attn_kernel(C, C4, N, TQ, NQ):
    def kernel(x_ref, wq_ref, wv_ref, bv_ref, wt_ref, bt_ref,
               t_ref, ssum_ref, ssq_ref,
               xk_scr, xv_scr, u_scr, cs_scr):
        q = pl.program_id(1)

        @pl.when(q == 0)
        def _init():
            x_bf = x_ref[0].astype(jnp.bfloat16)                                   # (C, N)
            # shared q/k projection (weights are tied in the torch module)
            xk = jnp.dot(wq_ref[...], x_bf, preferred_element_type=jnp.float32)    # (C4, N)
            xk_scr[...] = xk.astype(jnp.bfloat16)
            # v projection (+bias)
            xv = jnp.dot(wv_ref[...], x_bf, preferred_element_type=jnp.float32) + bv_ref[...]
            xv_scr[...] = xv.astype(jnp.bfloat16)
            u_scr[...] = jnp.zeros_like(u_scr)
            cs_scr[...] = jnp.zeros_like(cs_scr)

        # ---- one query tile: row-block softmax + accumulation ----
        qs = pl.multiple_of(q * TQ, TQ)
        xq = jnp.transpose(xk_scr[:, pl.ds(qs, TQ)])                                # (TQ, C4) bf16
        energy = jnp.dot(xq, xk_scr[...], preferred_element_type=jnp.float32)       # (TQ, N) f32
        m = jnp.max(energy, axis=-1, keepdims=True)
        # TODO(synk): on v6e/v7x the exp could run in bf16 on the EUP; kept f32
        # here for v5e portability and accuracy headroom.
        p = jnp.exp(energy - m)
        rsum = jnp.sum(p, axis=-1, keepdims=True)
        attn_f = p * pl.reciprocal(rsum, approx=True)                               # (TQ, N) f32
        attn = attn_f.astype(jnp.bfloat16)
        # attention column-sum (query-axis sum) as a cheap reduce: keeps the
        # dominant xv @ attn matmul at M == C (no +1 row crossing an MXU tile).
        cs_scr[...] += jnp.sum(attn_f, axis=0, keepdims=True)                       # (1, N)
        xv_tile = xv_scr[:, pl.ds(qs, TQ)]                                          # (C, TQ) bf16
        u_scr[...] += jnp.dot(xv_tile, attn, preferred_element_type=jnp.float32)    # (C, N)

        @pl.when(q == NQ - 1)
        def _finalize():
            inv_col = 1.0 / (cs_scr[...] + 1e-9)                                    # exact, (1, N)
            x_r = u_scr[...] * inv_col                                              # (C, N)
            diff = (x_ref[0] - x_r).astype(jnp.bfloat16)
            t = jnp.dot(wt_ref[...], diff, preferred_element_type=jnp.float32) + bt_ref[...]
            t_ref[0] = t.astype(t_ref.dtype)                                        # bf16 store
            # partial BatchNorm statistics for this batch element (f32)
            ssum_ref[0] = jnp.sum(t, axis=1, keepdims=True)                         # (C, 1)
            ssq_ref[0] = jnp.sum(t * t, axis=1, keepdims=True)                      # (C, 1)

    return kernel


def _bn_apply_kernel(x_ref, t_ref, scale_ref, shift_ref, o_ref):
    # out = x + relu(scale * t + shift), one FMA per element, lane-dense tiles.
    bn = scale_ref[...] * t_ref[0].astype(jnp.float32) + shift_ref[...]
    o_ref[0] = x_ref[0] + jnp.maximum(bn, 0.0)


def oa_layer(x, params):
    B, C, N = x.shape
    C4 = params["wq"].shape[0]

    wq = params["wq"].astype(jnp.bfloat16)
    wv = params["wv"].astype(jnp.bfloat16)
    wt = params["wt"].astype(jnp.bfloat16)
    bv = params["bv"].reshape(C, 1).astype(jnp.float32)
    bt = params["bt"].reshape(C, 1).astype(jnp.float32)
    gamma = params["gamma"].astype(jnp.float32)
    beta = params["beta"].astype(jnp.float32)

    vmem_limit = _vmem_limit_bytes()
    TQ = _pick_tq(C, C4, N, int(vmem_limit * 0.75))
    NQ = max(N // TQ, 1)

    kernel = _make_attn_kernel(C, C4, N, TQ, NQ)
    t, ssum, ssq = pl.pallas_call(
        kernel,
        out_shape=(
            jax.ShapeDtypeStruct((B, C, N), jnp.bfloat16),   # t, written once / read once
            jax.ShapeDtypeStruct((B, C, 1), jnp.float32),    # per-batch sum(t)
            jax.ShapeDtypeStruct((B, C, 1), jnp.float32),    # per-batch sum(t^2)
        ),
        grid=(B, NQ),
        in_specs=[
            pl.BlockSpec((1, C, N), lambda b, q: (b, 0, 0)),
            pl.BlockSpec((C4, C), lambda b, q: (0, 0)),
            pl.BlockSpec((C, C), lambda b, q: (0, 0)),
            pl.BlockSpec((C, 1), lambda b, q: (0, 0)),
            pl.BlockSpec((C, C), lambda b, q: (0, 0)),
            pl.BlockSpec((C, 1), lambda b, q: (0, 0)),
        ],
        out_specs=(
            pl.BlockSpec((1, C, N), lambda b, q: (b, 0, 0)),
            pl.BlockSpec((1, C, 1), lambda b, q: (b, 0, 0)),
            pl.BlockSpec((1, C, 1), lambda b, q: (b, 0, 0)),
        ),
        scratch_shapes=[
            pltpu.VMEM((C4, N), jnp.bfloat16),    # xk
            pltpu.VMEM((C, N), jnp.bfloat16),     # xv
            pltpu.VMEM((C, N), jnp.float32),      # xv @ attn accumulator
            pltpu.VMEM((1, N), jnp.float32),      # attention column-sum
        ],
        compiler_params=pltpu.CompilerParams(
            dimension_semantics=("parallel", "arbitrary"),
            vmem_limit_bytes=vmem_limit,
        ),
    )(x, wq, wv, bv, wt, bt)

    # ---- tiny per-channel combine (training-mode BN, biased variance) ----
    cnt = float(B * N)
    s1 = jnp.sum(ssum[:, :, 0], axis=0)              # (C,)
    s2 = jnp.sum(ssq[:, :, 0], axis=0)                # (C,)
    mean = s1 / cnt
    var = s2 / cnt - mean * mean
    scale = gamma * jax.lax.rsqrt(var + 1e-5)         # (C,)
    shift = beta - mean * scale                       # (C,)

    # ---- pass 2: tiled, lane-dense apply (HBM-bandwidth bound) ----
    TN = _pick_tile(N, (2048, 1024, 512, 256, 128))
    out = pl.pallas_call(
        _bn_apply_kernel,
        out_shape=jax.ShapeDtypeStruct((B, C, N), jnp.float32),
        grid=(B, N // TN),
        in_specs=[
            pl.BlockSpec((1, C, TN), lambda b, n: (b, 0, n)),
            pl.BlockSpec((1, C, TN), lambda b, n: (b, 0, n)),
            pl.BlockSpec((C, 1), lambda b, n: (0, 0)),
            pl.BlockSpec((C, 1), lambda b, n: (0, 0)),
        ],
        out_specs=pl.BlockSpec((1, C, TN), lambda b, n: (b, 0, n)),
        compiler_params=pltpu.CompilerParams(
            dimension_semantics=("parallel", "parallel"),
            vmem_limit_bytes=vmem_limit,
        ),
    )(x, t, scale.reshape(C, 1), shift.reshape(C, 1))
    return out


def init_params(key, channels):
    c4 = channels // 4
    k1, k2, k3, k4, k5 = jax.random.split(key, 5)
    return {
        # q_conv.weight is tied to k_conv.weight -> single shared weight.
        "wq": jax.random.normal(k1, (c4, channels), jnp.float32) * 0.1,
        "wv": jax.random.normal(k2, (channels, channels), jnp.float32) * 0.1,
        "bv": jax.random.normal(k3, (channels,), jnp.float32) * 0.1,
        "wt": jax.random.normal(k4, (channels, channels), jnp.float32) * 0.1,
        "bt": jax.random.normal(k5, (channels,), jnp.float32) * 0.1,
        # BatchNorm1d default init.
        "gamma": jnp.ones((channels,), jnp.float32),
        "beta": jnp.zeros((channels,), jnp.float32),
    }


def oa_layer_reference(x, params, compute_dtype=jnp.bfloat16):
    """Pure-JAX reference mirroring the PyTorch forward (training-mode BN).

    Matmul operands are cast to `compute_dtype` (with f32 accumulation) to
    mirror the kernel's MXU precision; all softmax / renorm / BN math is f32.
    """
    wq = params["wq"].astype(compute_dtype)
    wv = params["wv"].astype(compute_dtype)
    wt = params["wt"].astype(compute_dtype)
    bv, bt = params["bv"], params["bt"]
    gamma, beta = params["gamma"], params["beta"]

    xb = x.astype(compute_dtype)
    xk = jnp.einsum("oc,bcn->bon", wq, xb, preferred_element_type=jnp.float32)
    xq = jnp.transpose(xk, (0, 2, 1))
    xv = jnp.einsum("oc,bcn->bon", wv, xb,
                    preferred_element_type=jnp.float32) + bv[None, :, None]
    energy = jnp.einsum("bnc,bcm->bnm", xq.astype(compute_dtype), xk.astype(compute_dtype),
                        preferred_element_type=jnp.float32)
    attn = jax.nn.softmax(energy, axis=-1)
    attn = attn / (1e-9 + attn.sum(axis=1, keepdims=True))
    x_r = jnp.einsum("bcn,bnm->bcm", xv.astype(compute_dtype), attn.astype(compute_dtype),
                     preferred_element_type=jnp.float32)
    t = jnp.einsum("oc,bcn->bon", wt, (x - x_r).astype(compute_dtype),
                   preferred_element_type=jnp.float32) + bt[None, :, None]
    mean = t.mean(axis=(0, 2), keepdims=True)
    var = ((t - mean) ** 2).mean(axis=(0, 2), keepdims=True)
    bn = gamma[None, :, None] * (t - mean) * jax.lax.rsqrt(var + 1e-5) + beta[None, :, None]
    return x + jnp.maximum(bn, 0.0)


if __name__ == "__main__":
    B, C, N = 2, 32, 256   # batch, channels, points (C // 4 = 8, N lane-dense)
    key = jax.random.PRNGKey(0)
    kx, kp = jax.random.split(key)
    x = jax.random.normal(kx, (B, C, N), jnp.float32)
    params = init_params(kp, C)

    out = jax.block_until_ready(jax.jit(oa_layer)(x, params))
    ref = jax.block_until_ready(oa_layer_reference(x, params))

    assert out.shape == (B, C, N)
    max_err = float(jnp.max(jnp.abs(out - ref)))
    assert jnp.allclose(out, ref, atol=2e-2, rtol=2e-2), max_err
    print("KERNEL_OK")
</pallas_src>

<mosaic_0001>
module attributes {stable_mosaic.version = 11 : i64} {
  func.func @_bn_apply_kernel(%arg0: i32, %arg1: i32, %arg2: memref<1x32x256xf32, #tpu.memory_space<vmem>>, %arg3: memref<1x32x256xbf16, #tpu.memory_space<vmem>>, %arg4: memref<32x1xf32, #tpu.memory_space<vmem>>, %arg5: memref<32x1xf32, #tpu.memory_space<vmem>>, %arg6: memref<1x32x256xf32, #tpu.memory_space<vmem>>) attributes {dimension_semantics = [#tpu.dimension_semantics<parallel>, #tpu.dimension_semantics<parallel>], iteration_bounds = array<i64: 2, 1>, scalar_prefetch = 0 : i64, scratch_operands = 0 : i64, tpu.core_type = #tpu.core_type<tc>, window_params = [{transform_indices = @transform_0, window_bounds = array<i64: 1, 32, 256>}, {transform_indices = @transform_1, window_bounds = array<i64: 1, 32, 256>}, {pipeline_mode = #tpu.pipeline_mode<synchronous>, transform_indices = @transform_2, window_bounds = array<i64: 32, 1>}, {pipeline_mode = #tpu.pipeline_mode<synchronous>, transform_indices = @transform_3, window_bounds = array<i64: 32, 1>}, {transform_indices = @transform_4, window_bounds = array<i64: 1, 32, 256>}]} {
    %c0 = arith.constant 0 : index
    %c0_0 = arith.constant 0 : index
    %0 = vector.load %arg4[%c0, %c0_0] : memref<32x1xf32, #tpu.memory_space<vmem>>, vector<32x1xf32>
    %c0_1 = arith.constant 0 : index
    %c0_2 = arith.constant 0 : index
    %c0_3 = arith.constant 0 : index
    %1 = vector.load %arg3[%c0_1, %c0_2, %c0_3] : memref<1x32x256xbf16, #tpu.memory_space<vmem>>, vector<1x32x256xbf16>
    %2 = vector.shape_cast %1 : vector<1x32x256xbf16> to vector<32x256xbf16>
    %3 = arith.extf %2 : vector<32x256xbf16> to vector<32x256xf32>
    %4 = vector.broadcast %0 : vector<32x1xf32> to vector<32x256xf32>
    %5 = arith.mulf %4, %3 : vector<32x256xf32>
    %c0_4 = arith.constant 0 : index
    %c0_5 = arith.constant 0 : index
    %6 = vector.load %arg5[%c0_4, %c0_5] : memref<32x1xf32, #tpu.memory_space<vmem>>, vector<32x1xf32>
    %7 = vector.broadcast %6 : vector<32x1xf32> to vector<32x256xf32>
    %8 = arith.addf %5, %7 : vector<32x256xf32>
    %c0_6 = arith.constant 0 : index
    %c0_7 = arith.constant 0 : index
    %c0_8 = arith.constant 0 : index
    %9 = vector.load %arg2[%c0_6, %c0_7, %c0_8] : memref<1x32x256xf32, #tpu.memory_space<vmem>>, vector<1x32x256xf32>
    %10 = vector.shape_cast %9 : vector<1x32x256xf32> to vector<32x256xf32>
    %cst = arith.constant 0.000000e+00 : f32
    %11 = vector.broadcast %cst : f32 to vector<32x256xf32>
    %12 = arith.maximumf %8, %11 : vector<32x256xf32>
    %13 = arith.addf %10, %12 : vector<32x256xf32>
    %c0_9 = arith.constant 0 : index
    %c0_10 = arith.constant 0 : index
    %c0_11 = arith.constant 0 : index
    %14 = vector.load %arg6[%c0_9, %c0_10, %c0_11] : memref<1x32x256xf32, #tpu.memory_space<vmem>>, vector<1x32x256xf32>
    %15 = vector.shape_cast %14 : vector<1x32x256xf32> to vector<32x256xf32>
    %16 = vector.shape_cast %13 : vector<32x256xf32> to vector<1x32x256xf32>
    tpu.vector_store %arg6[%c0_9, %c0_10, %c0_11], %16 {strides = array<i32>} : memref<1x32x256xf32, #tpu.memory_space<vmem>>, vector<1x32x256xf32>,
    return
  }
  func.func @transform_0(%arg0: i32, %arg1: i32) -> (i32, i32, i32) {
    %c0_i32 = arith.constant 0 : i32
    %c0_i32_0 = arith.constant 0 : i32
    return %arg0, %c0_i32, %arg1 : i32, i32, i32
  }
  func.func @transform_1(%arg0: i32, %arg1: i32) -> (i32, i32, i32) {
    %c0_i32 = arith.constant 0 : i32
    %c0_i32_0 = arith.constant 0 : i32
    return %arg0, %c0_i32, %arg1 : i32, i32, i32
  }
  func.func @transform_2(%arg0: i32, %arg1: i32) -> (i32, i32) {
    %c0_i32 = arith.constant 0 : i32
    %c0_i32_0 = arith.constant 0 : i32
    %c0_i32_1 = arith.constant 0 : i32
    return %c0_i32, %c0_i32_0 : i32, i32
  }
  func.func @transform_3(%arg0: i32, %arg1: i32) -> (i32, i32) {
    %c0_i32 = arith.constant 0 : i32
    %c0_i32_0 = arith.constant 0 : i32
    %c0_i32_1 = arith.constant 0 : i32
    return %c0_i32, %c0_i32_0 : i32, i32
  }
  func.func @transform_4(%arg0: i32, %arg1: i32) -> (i32, i32, i32) {
    %c0_i32 = arith.constant 0 : i32
    %c0_i32_0 = arith.constant 0 : i32
    return %arg0, %c0_i32, %arg1 : i32, i32, i32
  }
}

module attributes {stable_mosaic.version = 11 : i64} {
  func.func @kernel(%arg0: i32, %arg1: i32, %arg2: memref<1x32x256xf32, #tpu.memory_space<vmem>>, %arg3: memref<8x32xbf16, #tpu.memory_space<vmem>>, %arg4: memref<32x32xbf16, #tpu.memory_space<vmem>>, %arg5: memref<32x1xf32, #tpu.memory_space<vmem>>, %arg6: memref<32x32xbf16, #tpu.memory_space<vmem>>, %arg7: memref<32x1xf32, #tpu.memory_space<vmem>>, %arg8: memref<1x32x256xbf16, #tpu.memory_space<vmem>>, %arg9: memref<1x32x1xf32, #tpu.memory_space<vmem>>, %arg10: memref<1x32x1xf32, #tpu.memory_space<vmem>>, %arg11: memref<8x256xbf16, #tpu.memory_space<vmem>>, %arg12: memref<32x256xbf16, #tpu.memory_space<vmem>>, %arg13: memref<32x256xf32, #tpu.memory_space<vmem>>, %arg14: memref<1x256xf32, #tpu.memory_space<vmem>>) attributes {dimension_semantics = [#tpu.dimension_semantics<parallel>, #tpu.dimension_semantics<arbitrary>], iteration_bounds = array<i64: 2, 1>, scalar_prefetch = 0 : i64, scratch_operands = 4 : i64, tpu.core_type = #tpu.core_type<tc>, window_params = [{transform_indices = @transform_0, window_bounds = array<i64: 1, 32, 256>}, {pipeline_mode = #tpu.pipeline_mode<synchronous>, transform_indices = @transform_1, window_bounds = array<i64: 8, 32>}, {pipeline_mode = #tpu.pipeline_mode<synchronous>, transform_indices = @transform_2, window_bounds = array<i64: 32, 32>}, {pipeline_mode = #tpu.pipeline_mode<synchronous>, transform_indices = @transform_3, window_bounds = array<i64: 32, 1>}, {pipeline_mode = #tpu.pipeline_mode<synchronous>, transform_indices = @transform_4, window_bounds = array<i64: 32, 32>}, {pipeline_mode = #tpu.pipeline_mode<synchronous>, transform_indices = @transform_5, window_bounds = array<i64: 32, 1>}, {transform_indices = @transform_6, window_bounds = array<i64: 1, 32, 256>}, {transform_indices = @transform_7, window_bounds = array<i64: 1, 32, 1>}, {transform_indices = @transform_8, window_bounds = array<i64: 1, 32, 1>}]} {
    %c0_i32 = arith.constant 0 : i32
    %0 = arith.cmpi eq, %arg1, %c0_i32 : i32
    %1 = arith.extui %0 : i1 to i32
    %c0_i32_0 = arith.constant 0 : i32
    %2 = arith.cmpi ne, %1, %c0_i32_0 : i32
    scf.if %2 {
      %c0_18 = arith.constant 0 : index
      %c0_19 = arith.constant 0 : index
      %c0_20 = arith.constant 0 : index
      %35 = vector.load %arg2[%c0_18, %c0_19, %c0_20] : memref<1x32x256xf32, #tpu.memory_space<vmem>>, vector<1x32x256xf32>
      %36 = vector.shape_cast %35 : vector<1x32x256xf32> to vector<32x256xf32>
      %37 = arith.truncf %36 : vector<32x256xf32> to vector<32x256xbf16>
      %c0_21 = arith.constant 0 : index
      %c0_22 = arith.constant 0 : index
      %38 = vector.load %arg3[%c0_21, %c0_22] : memref<8x32xbf16, #tpu.memory_space<vmem>>, vector<8x32xbf16>
      %cst_23 = arith.constant dense<0.000000e+00> : vector<8x256xf32>
      %39 = tpu.matmul %38, %37, %cst_23 {dimension_numbers = #tpu.dot_dimension_numbers<[1], [0], [0], [1], [0, 0, 1, 1], [], []>} : vector<8x32xbf16>, vector<32x256xbf16>, vector<8x256xf32> -> vector<8x256xf32>
      %40 = arith.truncf %39 : vector<8x256xf32> to vector<8x256xbf16>
      %c0_24 = arith.constant 0 : index
      %c0_25 = arith.constant 0 : index
      %41 = vector.load %arg11[%c0_24, %c0_25] : memref<8x256xbf16, #tpu.memory_space<vmem>>, vector<8x256xbf16>
      tpu.vector_store %arg11[%c0_24, %c0_25], %40 {strides = array<i32>} : memref<8x256xbf16, #tpu.memory_space<vmem>>, vector<8x256xbf16>,
      %c0_26 = arith.constant 0 : index
      %c0_27 = arith.constant 0 : index
      %42 = vector.load %arg4[%c0_26, %c0_27] : memref<32x32xbf16, #tpu.memory_space<vmem>>, vector<32x32xbf16>
      %cst_28 = arith.constant dense<0.000000e+00> : vector<32x256xf32>
      %43 = tpu.matmul %42, %37, %cst_28 {dimension_numbers = #tpu.dot_dimension_numbers<[1], [0], [0], [1], [0, 0, 1, 1], [], []>} : vector<32x32xbf16>, vector<32x256xbf16>, vector<32x256xf32> -> vector<32x256xf32>
      %c0_29 = arith.constant 0 : index
      %c0_30 = arith.constant 0 : index
      %44 = vector.load %arg5[%c0_29, %c0_30] : memref<32x1xf32, #tpu.memory_space<vmem>>, vector<32x1xf32>
      %45 = vector.broadcast %44 : vector<32x1xf32> to vector<32x256xf32>
      %46 = arith.addf %43, %45 : vector<32x256xf32>
      %47 = arith.truncf %46 : vector<32x256xf32> to vector<32x256xbf16>
      %c0_31 = arith.constant 0 : index
      %c0_32 = arith.constant 0 : index
      %48 = vector.load %arg12[%c0_31, %c0_32] : memref<32x256xbf16, #tpu.memory_space<vmem>>, vector<32x256xbf16>
      tpu.vector_store %arg12[%c0_31, %c0_32], %47 {strides = array<i32>} : memref<32x256xbf16, #tpu.memory_space<vmem>>, vector<32x256xbf16>,
      %cst_33 = arith.constant 0.000000e+00 : f32
      %49 = vector.broadcast %cst_33 : f32 to vector<32x256xf32>
      %c0_34 = arith.constant 0 : index
      %c0_35 = arith.constant 0 : index
      %50 = vector.load %arg13[%c0_34, %c0_35] : memref<32x256xf32, #tpu.memory_space<vmem>>, vector<32x256xf32>
      tpu.vector_store %arg13[%c0_34, %c0_35], %49 {strides = array<i32>} : memref<32x256xf32, #tpu.memory_space<vmem>>, vector<32x256xf32>,
      %cst_36 = arith.constant 0.000000e+00 : f32
      %51 = vector.broadcast %cst_36 : f32 to vector<1x256xf32>
      %c0_37 = arith.constant 0 : index
      %c0_38 = arith.constant 0 : index
      %52 = vector.load %arg14[%c0_37, %c0_38] : memref<1x256xf32, #tpu.memory_space<vmem>>, vector<1x256xf32>
      tpu.vector_store %arg14[%c0_37, %c0_38], %51 {strides = array<i32>} : memref<1x256xf32, #tpu.memory_space<vmem>>, vector<1x256xf32>,
    } else {
    }
    %c256_i32 = arith.constant 256 : i32
    %3 = arith.muli %arg1, %c256_i32 : i32
    %4 = tpu.assume_multiple %3, 256 : i32
    %c0 = arith.constant 0 : index
    %5 = arith.index_cast %4 : i32 to index
    %6 = vector.load %arg11[%c0, %5] : memref<8x256xbf16, #tpu.memory_space<vmem>>, vector<8x256xbf16>
    %7 = tpu.transpose %6, [1, 0] : vector<8x256xbf16> -> vector<256x8xbf16>
    %c0_1 = arith.constant 0 : index
    %c0_2 = arith.constant 0 : index
    %8 = vector.load %arg11[%c0_1, %c0_2] : memref<8x256xbf16, #tpu.memory_space<vmem>>, vector<8x256xbf16>
    %cst = arith.constant dense<0.000000e+00> : vector<256x256xf32>
    %9 = tpu.matmul %7, %8, %cst {dimension_numbers = #tpu.dot_dimension_numbers<[1], [0], [0], [1], [0, 0, 1, 1], [], []>} : vector<256x8xbf16>, vector<8x256xbf16>, vector<256x256xf32> -> vector<256x256xf32>
    %cst_3 = arith.constant dense<0xFF800000> : vector<256xf32>
    %10 = vector.multi_reduction <maximumf>, %9, %cst_3 [1] : vector<256x256xf32> to vector<256xf32>
    %11 = vector.shape_cast %10 : vector<256xf32> to vector<256x1xf32>
    %12 = vector.broadcast %11 : vector<256x1xf32> to vector<256x256xf32>
    %13 = arith.subf %9, %12 : vector<256x256xf32>
    %14 = math.exp %13 : vector<256x256xf32>
    %cst_4 = arith.constant dense<0.000000e+00> : vector<256xf32>
    %15 = vector.multi_reduction <add>, %14, %cst_4 [1] : vector<256x256xf32> to vector<256xf32>
    %16 = vector.shape_cast %15 : vector<256xf32> to vector<256x1xf32>
    %17 = tpu.reciprocal %16 {approx = true} : vector<256x1xf32> -> vector<256x1xf32>
    %18 = vector.broadcast %17 : vector<256x1xf32> to vector<256x256xf32>
    %19 = arith.mulf %14, %18 : vector<256x256xf32>
    %20 = arith.truncf %19 : vector<256x256xf32> to vector<256x256xbf16>
    %c0_5 = arith.constant 0 : index
    %c0_6 = arith.constant 0 : index
    %21 = vector.load %arg14[%c0_5, %c0_6] : memref<1x256xf32, #tpu.memory_space<vmem>>, vector<1x256xf32>
    %cst_7 = arith.constant dense<0.000000e+00> : vector<256xf32>
    %22 = vector.multi_reduction <add>, %19, %cst_7 [0] : vector<256x256xf32> to vector<256xf32>
    %23 = vector.shape_cast %22 : vector<256xf32> to vector<1x256xf32>
    %24 = arith.addf %21, %23 : vector<1x256xf32>
    %c0_8 = arith.constant 0 : index
    %c0_9 = arith.constant 0 : index
    %25 = vector.load %arg14[%c0_8, %c0_9] : memref<1x256xf32, #tpu.memory_space<vmem>>, vector<1x256xf32>
    tpu.vector_store %arg14[%c0_8, %c0_9], %24 {strides = array<i32>} : memref<1x256xf32, #tpu.memory_space<vmem>>, vector<1x256xf32>,
    %c0_10 = arith.constant 0 : index
    %26 = arith.index_cast %4 : i32 to index
    %27 = vector.load %arg12[%c0_10, %26] : memref<32x256xbf16, #tpu.memory_space<vmem>>, vector<32x256xbf16>
    %c0_11 = arith.constant 0 : index
    %c0_12 = arith.constant 0 : index
    %28 = vector.load %arg13[%c0_11, %c0_12] : memref<32x256xf32, #tpu.memory_space<vmem>>, vector<32x256xf32>
    %cst_13 = arith.constant dense<0.000000e+00> : vector<32x256xf32>
    %29 = tpu.matmul %27, %20, %cst_13 {dimension_numbers = #tpu.dot_dimension_numbers<[1], [0], [0], [1], [0, 0, 1, 1], [], []>} : vector<32x256xbf16>, vector<256x256xbf16>, vector<32x256xf32> -> vector<32x256xf32>
    %30 = arith.addf %28, %29 : vector<32x256xf32>
    %c0_14 = arith.constant 0 : index
    %c0_15 = arith.constant 0 : index
    %31 = vector.load %arg13[%c0_14, %c0_15] : memref<32x256xf32, #tpu.memory_space<vmem>>, vector<32x256xf32>
    tpu.vector_store %arg13[%c0_14, %c0_15], %30 {strides = array<i32>} : memref<32x256xf32, #tpu.memory_space<vmem>>, vector<32x256xf32>,
    %c0_i32_16 = arith.constant 0 : i32
    %32 = arith.cmpi eq, %arg1, %c0_i32_16 : i32
    %33 = arith.extui %32 : i1 to i32
    %c0_i32_17 = arith.constant 0 : i32
    %34 = arith.cmpi ne, %33, %c0_i32_17 : i32
    scf.if %34 {
      %c0_18 = arith.constant 0 : index
      %c0_19 = arith.constant 0 : index
      %35 = vector.load %arg14[%c0_18, %c0_19] : memref<1x256xf32, #tpu.memory_space<vmem>>, vector<1x256xf32>
      %cst_20 = arith.constant 9.99999971E-10 : f32
      %36 = vector.broadcast %cst_20 : f32 to vector<1x256xf32>
      %37 = arith.addf %35, %36 : vector<1x256xf32>
      %cst_21 = arith.constant 1.000000e+00 : f32
      %38 = vector.broadcast %cst_21 : f32 to vector<1x256xf32>
      %39 = arith.divf %38, %37 : vector<1x256xf32>
      %c0_22 = arith.constant 0 : index
      %c0_23 = arith.constant 0 : index
      %40 = vector.load %arg13[%c0_22, %c0_23] : memref<32x256xf32, #tpu.memory_space<vmem>>, vector<32x256xf32>
      %41 = vector.broadcast %39 : vector<1x256xf32> to vector<32x256xf32>
      %42 = arith.mulf %40, %41 : vector<32x256xf32>
      %c0_24 = arith.constant 0 : index
      %c0_25 = arith.constant 0 : index
      %c0_26 = arith.constant 0 : index
      %43 = vector.load %arg2[%c0_24, %c0_25, %c0_26] : memref<1x32x256xf32, #tpu.memory_space<vmem>>, vector<1x32x256xf32>
      %44 = vector.shape_cast %43 : vector<1x32x256xf32> to vector<32x256xf32>
      %45 = arith.subf %44, %42 : vector<32x256xf32>
      %46 = arith.truncf %45 : vector<32x256xf32> to vector<32x256xbf16>
      %c0_27 = arith.constant 0 : index
      %c0_28 = arith.constant 0 : index
      %47 = vector.load %arg6[%c0_27, %c0_28] : memref<32x32xbf16, #tpu.memory_space<vmem>>, vector<32x32xbf16>
      %cst_29 = arith.constant dense<0.000000e+00> : vector<32x256xf32>
      %48 = tpu.matmul %47, %46, %cst_29 {dimension_numbers = #tpu.dot_dimension_numbers<[1], [0], [0], [1], [0, 0, 1, 1], [], []>} : vector<32x32xbf16>, vector<32x256xbf16>, vector<32x256xf32> -> vector<32x256xf32>
      %c0_30 = arith.constant 0 : index
      %c0_31 = arith.constant 0 : index
      %49 = vector.load %arg7[%c0_30, %c0_31] : memref<32x1xf32, #tpu.memory_space<vmem>>, vector<32x1xf32>
      %50 = vector.broadcast %49 : vector<32x1xf32> to vector<32x256xf32>
      %51 = arith.addf %48, %50 : vector<32x256xf32>
      %52 = arith.truncf %51 : vector<32x256xf32> to vector<32x256xbf16>
      %c0_32 = arith.constant 0 : index
      %c0_33 = arith.constant 0 : index
      %c0_34 = arith.constant 0 : index
      %53 = vector.load %arg8[%c0_32, %c0_33, %c0_34] : memref<1x32x256xbf16, #tpu.memory_space<vmem>>, vector<1x32x256xbf16>
      %54 = vector.shape_cast %53 : vector<1x32x256xbf16> to vector<32x256xbf16>
      %55 = vector.shape_cast %52 : vector<32x256xbf16> to vector<1x32x256xbf16>
      tpu.vector_store %arg8[%c0_32, %c0_33, %c0_34], %55 {strides = array<i32>} : memref<1x32x256xbf16, #tpu.memory_space<vmem>>, vector<1x32x256xbf16>,
      %cst_35 = arith.constant dense<0.000000e+00> : vector<32xf32>
      %56 = vector.multi_reduction <add>, %51, %cst_35 [1] : vector<32x256xf32> to vector<32xf32>
      %57 = vector.shape_cast %56 : vector<32xf32> to vector<32x1xf32>
      %c0_36 = arith.constant 0 : index
      %c0_37 = arith.constant 0 : index
      %c0_38 = arith.constant 0 : index
      %58 = vector.load %arg9[%c0_36, %c0_37, %c0_38] : memref<1x32x1xf32, #tpu.memory_space<vmem>>, vector<1x32x1xf32>
      %59 = vector.shape_cast %58 : vector<1x32x1xf32> to vector<32x1xf32>
      %60 = vector.shape_cast %57 : vector<32x1xf32> to vector<1x32x1xf32>
      tpu.vector_store %arg9[%c0_36, %c0_37, %c0_38], %60 {strides = array<i32>} : memref<1x32x1xf32, #tpu.memory_space<vmem>>, vector<1x32x1xf32>,
      %61 = arith.mulf %51, %51 : vector<32x256xf32>
      %cst_39 = arith.constant dense<0.000000e+00> : vector<32xf32>
      %62 = vector.multi_reduction <add>, %61, %cst_39 [1] : vector<32x256xf32> to vector<32xf32>
      %63 = vector.shape_cast %62 : vector<32xf32> to vector<32x1xf32>
      %c0_40 = arith.constant 0 : index
      %c0_41 = arith.constant 0 : index
      %c0_42 = arith.constant 0 : index
      %64 = vector.load %arg10[%c0_40, %c0_41, %c0_42] : memref<1x32x1xf32, #tpu.memory_space<vmem>>, vector<1x32x1xf32>
      %65 = vector.shape_cast %64 : vector<1x32x1xf32> to vector<32x1xf32>
      %66 = vector.shape_cast %63 : vector<32x1xf32> to vector<1x32x1xf32>
      tpu.vector_store %arg10[%c0_40, %c0_41, %c0_42], %66 {strides = array<i32>} : memref<1x32x1xf32, #tpu.memory_space<vmem>>, vector<1x32x1xf32>,
    } else {
    }
    return
  }
  func.func @transform_0(%arg0: i32, %arg1: i32) -> (i32, i32, i32) {
    %c0_i32 = arith.constant 0 : i32
    %c0_i32_0 = arith.constant 0 : i32
    %c0_i32_1 = arith.constant 0 : i32
    return %arg0, %c0_i32, %c0_i32_0 : i32, i32, i32
  }
  func.func @transform_1(%arg0: i32, %arg1: i32) -> (i32, i32) {
    %c0_i32 = arith.constant 0 : i32
    %c0_i32_0 = arith.constant 0 : i32
    %c0_i32_1 = arith.constant 0 : i32
    return %c0_i32, %c0_i32_0 : i32, i32
  }
  func.func @transform_2(%arg0: i32, %arg1: i32) -> (i32, i32) {
    %c0_i32 = arith.constant 0 : i32
    %c0_i32_0 = arith.constant 0 : i32
    %c0_i32_1 = arith.constant 0 : i32
    return %c0_i32, %c0_i32_0 : i32, i32
  }
  func.func @transform_3(%arg0: i32, %arg1: i32) -> (i32, i32) {
    %c0_i32 = arith.constant 0 : i32
    %c0_i32_0 = arith.constant 0 : i32
    %c0_i32_1 = arith.constant 0 : i32
    return %c0_i32, %c0_i32_0 : i32, i32
  }
  func.func @transform_4(%arg0: i32, %arg1: i32) -> (i32, i32) {
    %c0_i32 = arith.constant 0 : i32
    %c0_i32_0 = arith.constant 0 : i32
    %c0_i32_1 = arith.constant 0 : i32
    return %c0_i32, %c0_i32_0 : i32, i32
  }
  func.func @transform_5(%arg0: i32, %arg1: i32) -> (i32, i32) {
    %c0_i32 = arith.constant 0 : i32
    %c0_i32_0 = arith.constant 0 : i32
    %c0_i32_1 = arith.constant 0 : i32
    return %c0_i32, %c0_i32_0 : i32, i32
  }
  func.func @transform_6(%arg0: i32, %arg1: i32) -> (i32, i32, i32) {
    %c0_i32 = arith.constant 0 : i32
    %c0_i32_0 = arith.constant 0 : i32
    %c0_i32_1 = arith.constant 0 : i32
    return %arg0, %c0_i32, %c0_i32_0 : i32, i32, i32
  }
  func.func @transform_7(%arg0: i32, %arg1: i32) -> (i32, i32, i32) {
    %c0_i32 = arith.constant 0 : i32
    %c0_i32_0 = arith.constant 0 : i32
    %c0_i32_1 = arith.constant 0 : i32
    return %arg0, %c0_i32, %c0_i32_0 : i32, i32, i32
  }
  func.func @transform_8(%arg0: i32, %arg1: i32) -> (i32, i32, i32) {
    %c0_i32 = arith.constant 0 : i32
    %c0_i32_0 = arith.constant 0 : i32
    %c0_i32_1 = arith.constant 0 : i32
    return %arg0, %c0_i32, %c0_i32_0 : i32, i32, i32
  }
}

</mosaic_0001>

<llo_original>
// kernel: oa_layer.3
$region0: #{oa_layer.3}
  #allocation0 [shape = 'u32[]', space=smem, size = 0x4, offset = 0x4, fixed_abs, tag = 'smem constant byte address 0x4 - core index']
  #allocation1 [shape = 'u32[144,128]{1,0:T(1,128)}', space=vmem, size = 0x12000, scoped, tag = 'internal scratch']
  %s0 = inlined_call_operand.vmem [shape: f32[2,32,256], index: 0, kind: input, shape index: {}]
  %s1 = inlined_call_operand.vmem [shape: bf16[2,32,256], index: 1, kind: input, shape index: {}]
  %s2 = inlined_call_operand.vmem [shape: f32[32,1], index: 2, kind: input, shape index: {}]
  %s3 = inlined_call_operand.vmem [shape: f32[32,1], index: 3, kind: input, shape index: {}]
  %s4 = inlined_call_operand.hbm [shape: f32[2,32,256], index: 4, kind: output, shape index: {}]
  %s5 = sld [smem:[#allocation0]]
  $region49: #{oa_layer.3} parent=0
    _
  %s7 = ssub.s32 1, %s5
  %s8 = scalar_select 0, %s7, %s5
  $region1: #{oa_layer.3} parent=0
    #allocation2 [shape = 'u8[65536]{0}', space=vmem, size = 0x10000, scoped, tag = 'output window, operand 0']
    #allocation3 [shape = 's32[2]{0}', space=sflag, size = 0x8, scoped, tag = 'scoped memory for oa_layer.3']
    %9 = vsyncpa [#allocation3], 0
    %s10 = scalar_lea.sflag [#allocation3], 1
    %11 = vsyncpa %s10, 0
    loop: start=0, step=1, limit=4
    $region2: #{oa_layer.3} parent=1 // loop_pre_header
      _
    $region3: #{oa_layer.3} parent=1 // loop_header
      %s13 = sphi 0, %s17
      %p14 = scmp.ge.s32.totalorder %s13, 4
      %s20 = sphi 0, %s32
      %s21 = sphi 0, %s28
      %s22 = sphi 0, %s20
      %s23 = sphi 0, %s21
      %s24 = sphi 0, %s22
      %s25 = sphi 0, %s23
      %s37 = sphi 0, %s39
      %s40 = sphi 0, %s37
      %s41 = sphi 0, %s40
      %s57 = sphi 0, %s41
      %s65 = sphi 0, %s67
      %s68 = sphi 0, %s65
      %s69 = sphi 0, %s68
      %s85 = sphi 0, %s69
      %s89 = sphi 0, %s89
      %s91 = sphi 0, %s89
      %s92 = sphi 0, %s91
      %s106 = sphi 0, %s92
      %s110 = sphi 0, %s110
      %s112 = sphi 0, %s110
      %s113 = sphi 0, %s112
      %s127 = sphi 0, %s113
      %s135 = sphi 0, %s137
      %s138 = sphi 0, %s135
      %s139 = sphi 0, %s138
      %s155 = sphi 0, %s139
    $region4: #{oa_layer.3} parent=1 // loop_header_branch
      %16 = sbr.rel (%p14) target = $region8
    $region5: #{oa_layer.3} parent=1 // loop_body
      %s18 = ssub.s32 %s13, 1
      %s19 = ssub.s32 %s13, 2
      %s26 = sadd.s32 1, %s21
      %p27 = scmp.ge.s32.totalorder %s26, 1
      %s28 = scalar_select %p27, 0, %s26
      %s29 = sadd.s32 1, %s20
      %s30 = scalar_select %p27, %s29, %s20
      %p31 = scmp.ge.s32.totalorder %s30, 2
      %s32 = scalar_select %p31, 0, %s30
      %s33 = ssub.s32 %s20, %s32
      %s34 = ssub.s32 %s21, %s28
      %s35 = sor.u32 %s33, %s34
      %p36 = scmp.eq.s32.totalorder %s35, 0
      %s38 = sadd.s32 %s37, 1
      %s39 = scalar_select %p36, %s37, %s38
      %p42 = pneg %p36
      %p43 = scmp.eq.s32.totalorder %s13, 1
      %p44 = por %p42, %p43
      %p45 = scmp.ne.s32.totalorder %s37, %s40
      %p46 = scmp.eq.s32.totalorder %s13, 0
      %p47 = por %p45, %p46
      %p48 = scmp.ne.s32.totalorder %s37, %s40
      %p49 = scmp.eq.s32.totalorder %s18, 1
      %p50 = por %p48, %p49
      %p51 = scmp.ne.s32.totalorder %s40, %s41
      %p52 = scmp.eq.s32.totalorder %s18, 0
      %p53 = por %p51, %p52
      %p54 = scmp.ne.s32.totalorder %s40, %s41
      %p55 = scmp.eq.s32.totalorder %s19, 1
      %p56 = por %p54, %p55
      %p58 = scmp.ne.s32.totalorder %s41, %s57
      %p59 = scmp.eq.s32.totalorder %s19, 0
      %p60 = por %p58, %p59
      %s61 = ssub.s32 %s20, %s32
      %s62 = ssub.s32 %s21, %s28
      %s63 = sor.u32 %s61, %s62
      %p64 = scmp.eq.s32.totalorder %s63, 0
      %s66 = sadd.s32 %s65, 1
      %s67 = scalar_select %p64, %s65, %s66
      %p70 = pneg %p64
      %p71 = scmp.eq.s32.totalorder %s13, 1
      %p72 = por %p70, %p71
      %p73 = scmp.ne.s32.totalorder %s65, %s68
      %p74 = scmp.eq.s32.totalorder %s13, 0
      %p75 = por %p73, %p74
      %p76 = scmp.ne.s32.totalorder %s65, %s68
      %p77 = scmp.eq.s32.totalorder %s18, 1
      %p78 = por %p76, %p77
      %p79 = scmp.ne.s32.totalorder %s68, %s69
      %p80 = scmp.eq.s32.totalorder %s18, 0
      %p81 = por %p79, %p80
      %p82 = scmp.ne.s32.totalorder %s68, %s69
      %p83 = scmp.eq.s32.totalorder %s19, 1
      %p84 = por %p82, %p83
      %p86 = scmp.ne.s32.totalorder %s69, %s85
      %p87 = scmp.eq.s32.totalorder %s19, 0
      %p88 = por %p86, %p87
      %s90 = sadd.s32 %s89, 1
      %p93 = scmp.eq.s32.totalorder %s13, 1
      %p94 = scmp.ne.s32.totalorder %s89, %s91
      %p95 = scmp.eq.s32.totalorder %s13, 0
      %p96 = por %p94, %p95
      %p97 = scmp.ne.s32.totalorder %s89, %s91
      %p98 = scmp.eq.s32.totalorder %s18, 1
      %p99 = por %p97, %p98
      %p100 = scmp.ne.s32.totalorder %s91, %s92
      %p101 = scmp.eq.s32.totalorder %s18, 0
      %p102 = por %p100, %p101
      %p103 = scmp.ne.s32.totalorder %s91, %s92
      %p104 = scmp.eq.s32.totalorder %s19, 1
      %p105 = por %p103, %p104
      %p107 = scmp.ne.s32.totalorder %s92, %s106
      %p108 = scmp.eq.s32.totalorder %s19, 0
      %p109 = por %p107, %p108
      %s111 = sadd.s32 %s110, 1
      %p114 = scmp.eq.s32.totalorder %s13, 1
      %p115 = scmp.ne.s32.totalorder %s110, %s112
      %p116 = scmp.eq.s32.totalorder %s13, 0
      %p117 = por %p115, %p116
      %p118 = scmp.ne.s32.totalorder %s110, %s112
      %p119 = scmp.eq.s32.totalorder %s18, 1
      %p120 = por %p118, %p119
      %p121 = scmp.ne.s32.totalorder %s112, %s113
      %p122 = scmp.eq.s32.totalorder %s18, 0
      %p123 = por %p121, %p122
      %p124 = scmp.ne.s32.totalorder %s112, %s113
      %p125 = scmp.eq.s32.totalorder %s19, 1
      %p126 = por %p124, %p125
      %p128 = scmp.ne.s32.totalorder %s113, %s127
      %p129 = scmp.eq.s32.totalorder %s19, 0
      %p130 = por %p128, %p129
      %s131 = ssub.s32 %s20, %s32
      %s132 = ssub.s32 %s21, %s28
      %s133 = sor.u32 %s131, %s132
      %p134 = scmp.eq.s32.totalorder %s133, 0
      %s136 = sadd.s32 %s135, 1
      %s137 = scalar_select %p134, %s135, %s136
      %p140 = pneg %p134
      %p141 = scmp.eq.s32.totalorder %s13, 1
      %p142 = por %p140, %p141
      %p143 = scmp.ne.s32.totalorder %s135, %s138
      %p144 = scmp.eq.s32.totalorder %s13, 0
      %p145 = por %p143, %p144
      %p146 = scmp.ne.s32.totalorder %s135, %s138
      %p147 = scmp.eq.s32.totalorder %s18, 1
      %p148 = por %p146, %p147
      %p149 = scmp.ne.s32.totalorder %s138, %s139
      %p150 = scmp.eq.s32.totalorder %s18, 0
      %p151 = por %p149, %p150
      %p152 = scmp.ne.s32.totalorder %s138, %s139
      %p153 = scmp.eq.s32.totalorder %s19, 1
      %p154 = por %p152, %p153
      %p156 = scmp.ne.s32.totalorder %s139, %s155
      %p157 = scmp.eq.s32.totalorder %s19, 0
      %p158 = por %p156, %p157
      %p159 = scmp.le.s32.totalorder 1, %s13
      %p160 = scmp.lt.s32.totalorder %s13, 3
      %p161 = pnand %p159, %p160
      %p162 = pneg %p161
      // Predicated region
      $region9: #{oa_layer.3} parent=5 // pred_check
        _
      $region10: #{oa_layer.3} parent=5 // pred_check_branch
        %164 = sbr.rel (%p161) target = $region12
      $region11: #{oa_layer.3} parent=5 // pred_region
        %s165 = ssub.s32 %s13, 1
        // Predicated region
        $region13: #{oa_layer.3} parent=11 // pred_check
          %p166 = pneg %p102
        $region14: #{oa_layer.3} parent=11 // pred_check_branch
          %168 = sbr.rel (%p166) target = $region16
        $region15: #{oa_layer.3} parent=11 // pred_region
          _
        $region16: #{oa_layer.3} parent=11 // pred_fallthru
          _
        // Predicated region
        $region17: #{oa_layer.3} parent=11 // pred_check
          %p169 = pneg %p123
        $region18: #{oa_layer.3} parent=11 // pred_check_branch
          %171 = sbr.rel (%p169) target = $region20
        $region19: #{oa_layer.3} parent=11 // pred_region
          _
        $region20: #{oa_layer.3} parent=11 // pred_fallthru
          _
      $region12: #{oa_layer.3} parent=5 // pred_fallthru
        _
      %p172 = scmp.lt.s32.totalorder %s13, 2
      // Predicated region
      $region21: #{oa_layer.3} parent=5 // pred_check
        %p173 = pneg %p172
      $region22: #{oa_layer.3} parent=5 // pred_check_branch
        %175 = sbr.rel (%p173) target = $region24
      $region23: #{oa_layer.3} parent=5 // pred_region
        // Predicated region
        $region25: #{oa_layer.3} parent=23 // pred_check
          %p176 = pneg %p47
        $region26: #{oa_layer.3} parent=23 // pred_check_branch
          %178 = sbr.rel (%p176) target = $region28
        $region27: #{oa_layer.3} parent=23 // pred_region
          %s179 = smul.u32 2, %s21
          %p180 = scmp.lt.s32.totalorder %s20, 1
          %s181 = scalar_select %p180, %s20, 1
          %p182 = scmp.lt.s32.totalorder %s179, 1
          %s183 = scalar_select %p182, %s179, 1
          %s184 = smul.addr %s181, 8
          %s185 = sadd.s32 %s183, %s184
          %s186 = smul.addr %s185, 8
          %s187 = scalar_lea.vmem %s0, %s186
          %s188 = smul.u32 2, %s21
        $region28: #{oa_layer.3} parent=23 // pred_fallthru
          _
        // Predicated region
        $region29: #{oa_layer.3} parent=23 // pred_check
          %p189 = pneg %p75
        $region30: #{oa_layer.3} parent=23 // pred_check_branch
          %191 = sbr.rel (%p189) target = $region32
        $region31: #{oa_layer.3} parent=23 // pred_region
          %s192 = smul.u32 2, %s21
          %p193 = scmp.lt.s32.totalorder %s20, 1
          %s194 = scalar_select %p193, %s20, 1
          %p195 = scmp.lt.s32.totalorder %s192, 1
          %s196 = scalar_select %p195, %s192, 1
          %s197 = smul.addr %s194, 8
          %s198 = sadd.s32 %s196, %s197
          %s199 = smul.addr %s198, 4
          %s200 = scalar_lea.vmem %s1, %s199
          %s201 = smul.u32 2, %s21
        $region32: #{oa_layer.3} parent=23 // pred_fallthru
          _
      $region24: #{oa_layer.3} parent=5 // pred_fallthru
        _
      %p202 = scmp.le.s32.totalorder 1, %s13
      %p203 = scmp.lt.s32.totalorder %s13, 3
      %p204 = pnand %p202, %p203
      %p205 = pneg %p204
      // Predicated region
      $region33: #{oa_layer.3} parent=5 // pred_check
        _
      $region34: #{oa_layer.3} parent=5 // pred_check_branch
        %207 = sbr.rel (%p204) target = $region36
      $region35: #{oa_layer.3} parent=5 // pred_region
        %s208 = ssub.s32 %s13, 1
        %s209 = smul.u32 2, %s23
        %p210 = scmp.lt.s32.totalorder %s22, 1
        %s211 = scalar_select %p210, %s22, 1
        %p212 = scmp.lt.s32.totalorder %s209, 1
        %s213 = scalar_select %p212, %s209, 1
        %s214 = smul.addr %s211, 8
        %s215 = sadd.s32 %s213, %s214
        %s216 = smul.addr %s215, 8
        %s217 = scalar_lea.vmem %s0, %s216
        %p218 = pneg %p53
        %p219 = pneg %p50
        %s220 = smul.u32 2, %s23
        %p221 = scmp.lt.s32.totalorder %s22, 1
        %s222 = scalar_select %p221, %s22, 1
        %p223 = scmp.lt.s32.totalorder %s220, 1
        %s224 = scalar_select %p223, %s220, 1
        %s225 = smul.addr %s222, 8
        %s226 = sadd.s32 %s224, %s225
        %s227 = smul.addr %s226, 4
        %s228 = scalar_lea.vmem %s1, %s227
        %p229 = pneg %p81
        %p230 = pneg %p78
        %p231 = pneg %p102
        %p232 = pneg %p99
        %p233 = pneg %p123
        %p234 = pneg %p120
        %p235 = pneg %p151
        %p236 = pneg %p148
        %s237 = sand.u32 %s138, 1
        %s238 = scalar_lea.sflag [#allocation3], %s237
        %s239 = sand.u32 %s138, 1
        %s240 = smul.addr %s239, 64
        %s241 = scalar_lea.vmem [#allocation2], %s240
        %s242 = smul.u32 2, %s23
        %p243 = scmp.lt.s32.totalorder %s22, 1
        %s244 = scalar_select %p243, %s22, 1
        %p245 = scmp.lt.s32.totalorder %s242, 1
        %s246 = scalar_select %p245, %s242, 1
        %s247 = smul.addr %s244, 8
        %s248 = sadd.s32 %s246, %s247
        %s249 = smul.addr %s248, 8
        %s250 = scalar_lea.vmem %s0, %s249
        %s251 = smul.u32 2, %s23
        %s252 = smul.u32 2, %s23
        %p253 = scmp.lt.s32.totalorder %s22, 1
        %s254 = scalar_select %p253, %s22, 1
        %p255 = scmp.lt.s32.totalorder %s252, 1
        %s256 = scalar_select %p255, %s252, 1
        %s257 = smul.addr %s254, 8
        %s258 = sadd.s32 %s256, %s257
        %s259 = smul.addr %s258, 4
        %s260 = scalar_lea.vmem %s1, %s259
        %s261 = smul.u32 2, %s23
        %s262 = smul.u32 2, %s23
        %v263 = vld [vmem:[%s2] sm:$0xff]
        %v264 = vld [vmem:[%s2 + $0x8] sm:$0xff]
        %v265 = vld [vmem:[%s2 + $0x10] sm:$0xff]
        %v266 = vld [vmem:[%s2 + $0x18] sm:$0xff]
        %v267 = vld [vmem:[%s260] sm:$0xff]
        %v268 = vld [vmem:[%s260 + $0x8] sm:$0xff]
        %v269 = vld [vmem:[%s260 + $0x10] sm:$0xff]
        %v270 = vld [vmem:[%s260 + $0x18] sm:$0xff]
        %v271 = vunpack.c.l.bf16 %v267
        %v272 = vunpack.c.h.bf16 %v267
        %v273 = vunpack.c.l.bf16 %v268
        %v274 = vunpack.c.h.bf16 %v268
        %v275 = vunpack.c.l.bf16 %v269
        %v276 = vunpack.c.h.bf16 %v269
        %v277 = vunpack.c.l.bf16 %v270
        %v278 = vunpack.c.h.bf16 %v270
        %280 = vset.pattern.permute.xlu0 0
        %281 = vperm.xlu0 %280, %v263
        %v282 = vpop.permute.xlu0 %281
        %285 = vset.pattern.permute.xlu0 0
        %286 = vperm.xlu0 %285, %v264
        %v287 = vpop.permute.xlu0 %286
        %290 = vset.pattern.permute.xlu0 0
        %291 = vperm.xlu0 %290, %v265
        %v292 = vpop.permute.xlu0 %291
        %295 = vset.pattern.permute.xlu0 0
        %296 = vperm.xlu0 %295, %v266
        %v297 = vpop.permute.xlu0 %296
        %v299 = vmul.f32 %v282, %v271
        %v300 = vmul.f32 %v282, %v272
        %v301 = vmul.f32 %v287, %v273
        %v302 = vmul.f32 %v287, %v274
        %v303 = vmul.f32 %v292, %v275
        %v304 = vmul.f32 %v292, %v276
        %v305 = vmul.f32 %v297, %v277
        %v306 = vmul.f32 %v297, %v278
        %v307 = vld [vmem:[%s3] sm:$0xff]
        %v308 = vld [vmem:[%s3 + $0x8] sm:$0xff]
        %v309 = vld [vmem:[%s3 + $0x10] sm:$0xff]
        %v310 = vld [vmem:[%s3 + $0x18] sm:$0xff]
        %312 = vset.pattern.permute.xlu0 0
        %313 = vperm.xlu0 %312, %v307
        %v314 = vpop.permute.xlu0 %313
        %317 = vset.pattern.permute.xlu0 0
        %318 = vperm.xlu0 %317, %v308
        %v319 = vpop.permute.xlu0 %318
        %322 = vset.pattern.permute.xlu0 0
        %323 = vperm.xlu0 %322, %v309
        %v324 = vpop.permute.xlu0 %323
        %327 = vset.pattern.permute.xlu0 0
        %328 = vperm.xlu0 %327, %v310
        %v329 = vpop.permute.xlu0 %328
        %v331 = vadd.f32 %v299, %v314
        %v332 = vadd.f32 %v300, %v314
        %v333 = vadd.f32 %v301, %v319
        %v334 = vadd.f32 %v302, %v319
        %v335 = vadd.f32 %v303, %v324
        %v336 = vadd.f32 %v304, %v324
        %v337 = vadd.f32 %v305, %v329
        %v338 = vadd.f32 %v306, %v329
        %v339 = vld [vmem:[%s250] sm:$0xff]
        %v340 = vld [vmem:[%s250 + $0x8] sm:$0xff]
        %v341 = vld [vmem:[%s250 + $0x10] sm:$0xff]
        %v342 = vld [vmem:[%s250 + $0x18] sm:$0xff]
        %v343 = vld [vmem:[%s250 + $0x20] sm:$0xff]
        %v344 = vld [vmem:[%s250 + $0x28] sm:$0xff]
        %v345 = vld [vmem:[%s250 + $0x30] sm:$0xff]
        %v346 = vld [vmem:[%s250 + $0x38] sm:$0xff]
        %v347 = vmax.f32 %v331, 0.0
        %v348 = vmax.f32 %v332, 0.0
        %v349 = vmax.f32 %v333, 0.0
        %v350 = vmax.f32 %v334, 0.0
        %v351 = vmax.f32 %v335, 0.0
        %v352 = vmax.f32 %v336, 0.0
        %v353 = vmax.f32 %v337, 0.0
        %v354 = vmax.f32 %v338, 0.0
        %v355 = vadd.f32 %v339, %v347
        %v356 = vadd.f32 %v340, %v348
        %v357 = vadd.f32 %v341, %v349
        %v358 = vadd.f32 %v342, %v350
        %v359 = vadd.f32 %v343, %v351
        %v360 = vadd.f32 %v344, %v352
        %v361 = vadd.f32 %v345, %v353
        %v362 = vadd.f32 %v346, %v354
        %363 = vst [vmem:[%s241] sm:$0xff] %v355
        %364 = vst [vmem:[%s241 + $0x8] sm:$0xff] %v356
        %365 = vst [vmem:[%s241 + $0x10] sm:$0xff] %v357
        %366 = vst [vmem:[%s241 + $0x18] sm:$0xff] %v358
        %367 = vst [vmem:[%s241 + $0x20] sm:$0xff] %v359
        %368 = vst [vmem:[%s241 + $0x28] sm:$0xff] %v360
        %369 = vst [vmem:[%s241 + $0x30] sm:$0xff] %v361
        %370 = vst [vmem:[%s241 + $0x38] sm:$0xff] %v362
        %s371 = sand.u32 %s138, 1
        %s372 = scalar_lea.sflag [#allocation3], %s371
        %s373 = sand.u32 %s138, 1
        %s374 = smul.addr %s373, 64
        %s375 = scalar_lea.vmem [#allocation2], %s374
        // Predicated region
        $region37: #{oa_layer.3} parent=35 // pred_check
          %p376 = pneg %p148
        $region38: #{oa_layer.3} parent=35 // pred_check_branch
          %378 = sbr.rel (%p376) target = $region40
        $region39: #{oa_layer.3} parent=35 // pred_region
          %s379 = smul.u32 2, %s23
          %s381 = ssub.s32 1024, 1024
          %382 = vsyncadd %s372, %s381
          %s383 = smul.addr %s22, 8
          %s384 = sadd.s32 %s379, %s383
          %s385 = smul.addr %s384, 128
          %s386 = scalar_lea.hbm %s4, %s385
          %s387 = sshll.u32 %s375, 4
          %s388 = int_to_ptr.vmem [resolvable:$true] %s387
          %393 = dma.vmem_to_hbm [thread:$0]  %s388, 1024, %s386, %s372, 256, 256, 16
        $region40: #{oa_layer.3} parent=35 // pred_fallthru
          _
      $region36: #{oa_layer.3} parent=5 // pred_fallthru
        _
      %p394 = scmp.le.s32.totalorder 2, %s13
      // Predicated region
      $region41: #{oa_layer.3} parent=5 // pred_check
        %p395 = pneg %p394
      $region42: #{oa_layer.3} parent=5 // pred_check_branch
        %397 = sbr.rel (%p395) target = $region44
      $region43: #{oa_layer.3} parent=5 // pred_region
        %s398 = ssub.s32 %s13, 2
        // Predicated region
        $region45: #{oa_layer.3} parent=43 // pred_check
          %p399 = pneg %p154
        $region46: #{oa_layer.3} parent=43 // pred_check_branch
          %401 = sbr.rel (%p399) target = $region48
        $region47: #{oa_layer.3} parent=43 // pred_region
          %s402 = sand.u32 %s139, 1
          %s403 = scalar_lea.sflag [#allocation3], %s402
          %s404 = sand.u32 %s139, 1
          %s405 = smul.addr %s404, 64
          %s406 = scalar_lea.vmem [#allocation2], %s405
          %407 = dma.done %s403, 1024
        $region48: #{oa_layer.3} parent=43 // pred_fallthru
          _
      $region44: #{oa_layer.3} parent=5 // pred_fallthru
        _
    $region6: #{oa_layer.3} parent=1 // loop_footer
      %s17 = sadd.s32 1, %s13
    $region7: #{oa_layer.3} parent=1 // loop_footer_branch
      %12 = sbr.rel target = $region3
    $region8: #{oa_layer.3} parent=1 // loop_exit
      _
    %408 = vsyncpa [#allocation3], 1
    %s409 = scalar_lea.sflag [#allocation3], 1
    %410 = vsyncpa %s409, 1

// kernel: oa_layer.2
$region0: #{oa_layer.2}
  #allocation0 [shape = 'u32[]', space=smem, size = 0x4, offset = 0x4, fixed_abs, tag = 'smem constant byte address 0x4 - core index']
  #allocation1 [shape = 'u32[144,128]{1,0:T(1,128)}', space=vmem, size = 0x12000, scoped, tag = 'internal scratch']
  #allocation2 [shape = 'bf16[8,256]{1,0:T(8,128)(2,1)}', space=vmem, size = 0x1000, scoped, tag = 'scratch operand']
  #allocation3 [shape = 'bf16[32,256]{1,0:T(8,128)(2,1)}', space=vmem, size = 0x4000, scoped, tag = 'scratch operand']
  #allocation4 [shape = 'f32[32,256]{1,0:T(8,128)}', space=vmem, size = 0x8000, scoped, tag = 'scratch operand']
  #allocation5 [shape = 'f32[1,256]{1,0:T(1,128)}', space=vmem, size = 0x400, scoped, tag = 'scratch operand']
  %s0 = inlined_call_operand.vmem [shape: f32[2,32,256], index: 0, kind: input, shape index: {}]
  %s1 = inlined_call_operand.vmem [shape: bf16[8,32], index: 1, kind: input, shape index: {}]
  %s2 = inlined_call_operand.vmem [shape: bf16[32,32], index: 2, kind: input, shape index: {}]
  %s3 = inlined_call_operand.vmem [shape: f32[32,1], index: 3, kind: input, shape index: {}]
  %s4 = inlined_call_operand.vmem [shape: bf16[32,32], index: 4, kind: input, shape index: {}]
  %s5 = inlined_call_operand.vmem [shape: f32[32,1], index: 5, kind: input, shape index: {}]
  %s6 = inlined_call_operand.vmem [shape: bf16[2,32,256], index: 6, kind: output, shape index: {0}]
  %s7 = inlined_call_operand.vmem [shape: f32[2,32,1], index: 7, kind: output, shape index: {1}]
  %s8 = inlined_call_operand.vmem [shape: f32[2,32,1], index: 8, kind: output, shape index: {2}]
  %9 = xla_tuple %s6, %s7, %s8
  %s10 = sld [smem:[#allocation0]]
  $region81: #{oa_layer.2} parent=0
    _
  %s12 = ssub.s32 1, %s10
  %s13 = scalar_select 0, %s12, %s10
  loop: start=0, step=1, limit=4
  $region2: #{oa_layer.2} parent=0 // loop_pre_header
    _
  $region3: #{oa_layer.2} parent=0 // loop_header
    %s15 = sphi 0, %s19
    %p16 = scmp.ge.s32.totalorder %s15, 4
    %s22 = sphi 0, %s34
    %s23 = sphi 0, %s30
    %s24 = sphi 0, %s22
    %s25 = sphi 0, %s23
    %s26 = sphi 0, %s24
    %s27 = sphi 0, %s25
    %s37 = sphi 0, %s39
    %s40 = sphi 0, %s37
    %s41 = sphi 0, %s40
    %s57 = sphi 0, %s41
    %s61 = sphi 0, %s61
    %s63 = sphi 0, %s61
    %s64 = sphi 0, %s63
    %s78 = sphi 0, %s64
    %s82 = sphi 0, %s82
    %s84 = sphi 0, %s82
    %s85 = sphi 0, %s84
    %s99 = sphi 0, %s85
    %s103 = sphi 0, %s103
    %s105 = sphi 0, %s103
    %s106 = sphi 0, %s105
    %s120 = sphi 0, %s106
    %s124 = sphi 0, %s124
    %s126 = sphi 0, %s124
    %s127 = sphi 0, %s126
    %s141 = sphi 0, %s127
    %s145 = sphi 0, %s145
    %s147 = sphi 0, %s145
    %s148 = sphi 0, %s147
    %s162 = sphi 0, %s148
    %s168 = sphi 0, %s170
    %s171 = sphi 0, %s168
    %s172 = sphi 0, %s171
    %s188 = sphi 0, %s172
    %s194 = sphi 0, %s196
    %s197 = sphi 0, %s194
    %s198 = sphi 0, %s197
    %s214 = sphi 0, %s198
    %s220 = sphi 0, %s222
    %s223 = sphi 0, %s220
    %s224 = sphi 0, %s223
    %s240 = sphi 0, %s224
  $region4: #{oa_layer.2} parent=0 // loop_header_branch
    %18 = sbr.rel (%p16) target = $region8
  $region5: #{oa_layer.2} parent=0 // loop_body
    %s20 = ssub.s32 %s15, 1
    %s21 = ssub.s32 %s15, 2
    %s28 = sadd.s32 1, %s23
    %p29 = scmp.ge.s32.totalorder %s28, 1
    %s30 = scalar_select %p29, 0, %s28
    %s31 = sadd.s32 1, %s22
    %s32 = scalar_select %p29, %s31, %s22
    %p33 = scmp.ge.s32.totalorder %s32, 2
    %s34 = scalar_select %p33, 0, %s32
    %s35 = ssub.s32 %s22, %s34
    %p36 = scmp.eq.s32.totalorder %s35, 0
    %s38 = sadd.s32 %s37, 1
    %s39 = scalar_select %p36, %s37, %s38
    %p42 = pneg %p36
    %p43 = scmp.eq.s32.totalorder %s15, 1
    %p44 = por %p42, %p43
    %p45 = scmp.ne.s32.totalorder %s37, %s40
    %p46 = scmp.eq.s32.totalorder %s15, 0
    %p47 = por %p45, %p46
    %p48 = scmp.ne.s32.totalorder %s37, %s40
    %p49 = scmp.eq.s32.totalorder %s20, 1
    %p50 = por %p48, %p49
    %p51 = scmp.ne.s32.totalorder %s40, %s41
    %p52 = scmp.eq.s32.totalorder %s20, 0
    %p53 = por %p51, %p52
    %p54 = scmp.ne.s32.totalorder %s40, %s41
    %p55 = scmp.eq.s32.totalorder %s21, 1
    %p56 = por %p54, %p55
    %p58 = scmp.ne.s32.totalorder %s41, %s57
    %p59 = scmp.eq.s32.totalorder %s21, 0
    %p60 = por %p58, %p59
    %s62 = sadd.s32 %s61, 1
    %p65 = scmp.eq.s32.totalorder %s15, 1
    %p66 = scmp.ne.s32.totalorder %s61, %s63
    %p67 = scmp.eq.s32.totalorder %s15, 0
    %p68 = por %p66, %p67
    %p69 = scmp.ne.s32.totalorder %s61, %s63
    %p70 = scmp.eq.s32.totalorder %s20, 1
    %p71 = por %p69, %p70
    %p72 = scmp.ne.s32.totalorder %s63, %s64
    %p73 = scmp.eq.s32.totalorder %s20, 0
    %p74 = por %p72, %p73
    %p75 = scmp.ne.s32.totalorder %s63, %s64
    %p76 = scmp.eq.s32.totalorder %s21, 1
    %p77 = por %p75, %p76
    %p79 = scmp.ne.s32.totalorder %s64, %s78
    %p80 = scmp.eq.s32.totalorder %s21, 0
    %p81 = por %p79, %p80
    %s83 = sadd.s32 %s82, 1
    %p86 = scmp.eq.s32.totalorder %s15, 1
    %p87 = scmp.ne.s32.totalorder %s82, %s84
    %p88 = scmp.eq.s32.totalorder %s15, 0
    %p89 = por %p87, %p88
    %p90 = scmp.ne.s32.totalorder %s82, %s84
    %p91 = scmp.eq.s32.totalorder %s20, 1
    %p92 = por %p90, %p91
    %p93 = scmp.ne.s32.totalorder %s84, %s85
    %p94 = scmp.eq.s32.totalorder %s20, 0
    %p95 = por %p93, %p94
    %p96 = scmp.ne.s32.totalorder %s84, %s85
    %p97 = scmp.eq.s32.totalorder %s21, 1
    %p98 = por %p96, %p97
    %p100 = scmp.ne.s32.totalorder %s85, %s99
    %p101 = scmp.eq.s32.totalorder %s21, 0
    %p102 = por %p100, %p101
    %s104 = sadd.s32 %s103, 1
    %p107 = scmp.eq.s32.totalorder %s15, 1
    %p108 = scmp.ne.s32.totalorder %s103, %s105
    %p109 = scmp.eq.s32.totalorder %s15, 0
    %p110 = por %p108, %p109
    %p111 = scmp.ne.s32.totalorder %s103, %s105
    %p112 = scmp.eq.s32.totalorder %s20, 1
    %p113 = por %p111, %p112
    %p114 = scmp.ne.s32.totalorder %s105, %s106
    %p115 = scmp.eq.s32.totalorder %s20, 0
    %p116 = por %p114, %p115
    %p117 = scmp.ne.s32.totalorder %s105, %s106
    %p118 = scmp.eq.s32.totalorder %s21, 1
    %p119 = por %p117, %p118
    %p121 = scmp.ne.s32.totalorder %s106, %s120
    %p122 = scmp.eq.s32.totalorder %s21, 0
    %p123 = por %p121, %p122
    %s125 = sadd.s32 %s124, 1
    %p128 = scmp.eq.s32.totalorder %s15, 1
    %p129 = scmp.ne.s32.totalorder %s124, %s126
    %p130 = scmp.eq.s32.totalorder %s15, 0
    %p131 = por %p129, %p130
    %p132 = scmp.ne.s32.totalorder %s124, %s126
    %p133 = scmp.eq.s32.totalorder %s20, 1
    %p134 = por %p132, %p133
    %p135 = scmp.ne.s32.totalorder %s126, %s127
    %p136 = scmp.eq.s32.totalorder %s20, 0
    %p137 = por %p135, %p136
    %p138 = scmp.ne.s32.totalorder %s126, %s127
    %p139 = scmp.eq.s32.totalorder %s21, 1
    %p140 = por %p138, %p139
    %p142 = scmp.ne.s32.totalorder %s127, %s141
    %p143 = scmp.eq.s32.totalorder %s21, 0
    %p144 = por %p142, %p143
    %s146 = sadd.s32 %s145, 1
    %p149 = scmp.eq.s32.totalorder %s15, 1
    %p150 = scmp.ne.s32.totalorder %s145, %s147
    %p151 = scmp.eq.s32.totalorder %s15, 0
    %p152 = por %p150, %p151
    %p153 = scmp.ne.s32.totalorder %s145, %s147
    %p154 = scmp.eq.s32.totalorder %s20, 1
    %p155 = por %p153, %p154
    %p156 = scmp.ne.s32.totalorder %s147, %s148
    %p157 = scmp.eq.s32.totalorder %s20, 0
    %p158 = por %p156, %p157
    %p159 = scmp.ne.s32.totalorder %s147, %s148
    %p160 = scmp.eq.s32.totalorder %s21, 1
    %p161 = por %p159, %p160
    %p163 = scmp.ne.s32.totalorder %s148, %s162
    %p164 = scmp.eq.s32.totalorder %s21, 0
    %p165 = por %p163, %p164
    %s166 = ssub.s32 %s22, %s34
    %p167 = scmp.eq.s32.totalorder %s166, 0
    %s169 = sadd.s32 %s168, 1
    %s170 = scalar_select %p167, %s168, %s169
    %p173 = pneg %p167
    %p174 = scmp.eq.s32.totalorder %s15, 1
    %p175 = por %p173, %p174
    %p176 = scmp.ne.s32.totalorder %s168, %s171
    %p177 = scmp.eq.s32.totalorder %s15, 0
    %p178 = por %p176, %p177
    %p179 = scmp.ne.s32.totalorder %s168, %s171
    %p180 = scmp.eq.s32.totalorder %s20, 1
    %p181 = por %p179, %p180
    %p182 = scmp.ne.s32.totalorder %s171, %s172
    %p183 = scmp.eq.s32.totalorder %s20, 0
    %p184 = por %p182, %p183
    %p185 = scmp.ne.s32.totalorder %s171, %s172
    %p186 = scmp.eq.s32.totalorder %s21, 1
    %p187 = por %p185, %p186
    %p189 = scmp.ne.s32.totalorder %s172, %s188
    %p190 = scmp.eq.s32.totalorder %s21, 0
    %p191 = por %p189, %p190
    %s192 = ssub.s32 %s22, %s34
    %p193 = scmp.eq.s32.totalorder %s192, 0
    %s195 = sadd.s32 %s194, 1
    %s196 = scalar_select %p193, %s194, %s195
    %p199 = pneg %p193
    %p200 = scmp.eq.s32.totalorder %s15, 1
    %p201 = por %p199, %p200
    %p202 = scmp.ne.s32.totalorder %s194, %s197
    %p203 = scmp.eq.s32.totalorder %s15, 0
    %p204 = por %p202, %p203
    %p205 = scmp.ne.s32.totalorder %s194, %s197
    %p206 = scmp.eq.s32.totalorder %s20, 1
    %p207 = por %p205, %p206
    %p208 = scmp.ne.s32.totalorder %s197, %s198
    %p209 = scmp.eq.s32.totalorder %s20, 0
    %p210 = por %p208, %p209
    %p211 = scmp.ne.s32.totalorder %s197, %s198
    %p212 = scmp.eq.s32.totalorder %s21, 1
    %p213 = por %p211, %p212
    %p215 = scmp.ne.s32.totalorder %s198, %s214
    %p216 = scmp.eq.s32.totalorder %s21, 0
    %p217 = por %p215, %p216
    %s218 = ssub.s32 %s22, %s34
    %p219 = scmp.eq.s32.totalorder %s218, 0
    %s221 = sadd.s32 %s220, 1
    %s222 = scalar_select %p219, %s220, %s221
    %p225 = pneg %p219
    %p226 = scmp.eq.s32.totalorder %s15, 1
    %p227 = por %p225, %p226
    %p228 = scmp.ne.s32.totalorder %s220, %s223
    %p229 = scmp.eq.s32.totalorder %s15, 0
    %p230 = por %p228, %p229
    %p231 = scmp.ne.s32.totalorder %s220, %s223
    %p232 = scmp.eq.s32.totalorder %s20, 1
    %p233 = por %p231, %p232
    %p234 = scmp.ne.s32.totalorder %s223, %s224
    %p235 = scmp.eq.s32.totalorder %s20, 0
    %p236 = por %p234, %p235
    %p237 = scmp.ne.s32.totalorder %s223, %s224
    %p238 = scmp.eq.s32.totalorder %s21, 1
    %p239 = por %p237, %p238
    %p241 = scmp.ne.s32.totalorder %s224, %s240
    %p242 = scmp.eq.s32.totalorder %s21, 0
    %p243 = por %p241, %p242
    %p244 = scmp.le.s32.totalorder 1, %s15
    %p245 = scmp.lt.s32.totalorder %s15, 3
    %p246 = pnand %p244, %p245
    %p247 = pneg %p246
    // Predicated region
    $region9: #{oa_layer.2} parent=5 // pred_check
      _
    $region10: #{oa_layer.2} parent=5 // pred_check_branch
      %249 = sbr.rel (%p246) target = $region12
    $region11: #{oa_layer.2} parent=5 // pred_region
      %s250 = ssub.s32 %s15, 1
      // Predicated region
      $region13: #{oa_layer.2} parent=11 // pred_check
        %p251 = pneg %p74
      $region14: #{oa_layer.2} parent=11 // pred_check_branch
        %253 = sbr.rel (%p251) target = $region16
      $region15: #{oa_layer.2} parent=11 // pred_region
        _
      $region16: #{oa_layer.2} parent=11 // pred_fallthru
        _
      // Predicated region
      $region17: #{oa_layer.2} parent=11 // pred_check
        %p254 = pneg %p95
      $region18: #{oa_layer.2} parent=11 // pred_check_branch
        %256 = sbr.rel (%p254) target = $region20
      $region19: #{oa_layer.2} parent=11 // pred_region
        _
      $region20: #{oa_layer.2} parent=11 // pred_fallthru
        _
      // Predicated region
      $region21: #{oa_layer.2} parent=11 // pred_check
        %p257 = pneg %p116
      $region22: #{oa_layer.2} parent=11 // pred_check_branch
        %259 = sbr.rel (%p257) target = $region24
      $region23: #{oa_layer.2} parent=11 // pred_region
        _
      $region24: #{oa_layer.2} parent=11 // pred_fallthru
        _
      // Predicated region
      $region25: #{oa_layer.2} parent=11 // pred_check
        %p260 = pneg %p137
      $region26: #{oa_layer.2} parent=11 // pred_check_branch
        %262 = sbr.rel (%p260) target = $region28
      $region27: #{oa_layer.2} parent=11 // pred_region
        _
      $region28: #{oa_layer.2} parent=11 // pred_fallthru
        _
      // Predicated region
      $region29: #{oa_layer.2} parent=11 // pred_check
        %p263 = pneg %p158
      $region30: #{oa_layer.2} parent=11 // pred_check_branch
        %265 = sbr.rel (%p263) target = $region32
      $region31: #{oa_layer.2} parent=11 // pred_region
        _
      $region32: #{oa_layer.2} parent=11 // pred_fallthru
        _
    $region12: #{oa_layer.2} parent=5 // pred_fallthru
      _
    %p266 = scmp.lt.s32.totalorder %s15, 2
    // Predicated region
    $region33: #{oa_layer.2} parent=5 // pred_check
      %p267 = pneg %p266
    $region34: #{oa_layer.2} parent=5 // pred_check_branch
      %269 = sbr.rel (%p267) target = $region36
    $region35: #{oa_layer.2} parent=5 // pred_region
      // Predicated region
      $region37: #{oa_layer.2} parent=35 // pred_check
        %p270 = pneg %p47
      $region38: #{oa_layer.2} parent=35 // pred_check_branch
        %272 = sbr.rel (%p270) target = $region40
      $region39: #{oa_layer.2} parent=35 // pred_region
        %p273 = scmp.lt.s32.totalorder %s22, 1
        %s274 = scalar_select %p273, %s22, 1
        %s275 = smul.addr %s274, 8
        %s276 = smul.addr %s275, 8
        %s277 = scalar_lea.vmem %s0, %s276
      $region40: #{oa_layer.2} parent=35 // pred_fallthru
        _
    $region36: #{oa_layer.2} parent=5 // pred_fallthru
      _
    %p278 = scmp.le.s32.totalorder 1, %s15
    %p279 = scmp.lt.s32.totalorder %s15, 3
    %p280 = pnand %p278, %p279
    %p281 = pneg %p280
    // Predicated region
    $region41: #{oa_layer.2} parent=5 // pred_check
      _
    $region42: #{oa_layer.2} parent=5 // pred_check_branch
      %283 = sbr.rel (%p280) target = $region44
    $region43: #{oa_layer.2} parent=5 // pred_region
      %s284 = ssub.s32 %s15, 1
      %p285 = scmp.lt.s32.totalorder %s24, 1
      %s286 = scalar_select %p285, %s24, 1
      %s287 = smul.addr %s286, 8
      %s288 = smul.addr %s287, 8
      %s289 = scalar_lea.vmem %s0, %s288
      %p290 = pneg %p53
      %p291 = pneg %p50
      %p292 = pneg %p74
      %p293 = pneg %p71
      %p294 = pneg %p95
      %p295 = pneg %p92
      %p296 = pneg %p116
      %p297 = pneg %p113
      %p298 = pneg %p137
      %p299 = pneg %p134
      %p300 = pneg %p158
      %p301 = pneg %p155
      %p302 = pneg %p184
      %p303 = pneg %p181
      %p304 = scmp.lt.s32.totalorder %s24, 1
      %s305 = scalar_select %p304, %s24, 1
      %s306 = smul.addr %s305, 8
      %s307 = smul.addr %s306, 4
      %s308 = scalar_lea.vmem %s6, %s307
      %p309 = pneg %p210
      %p310 = pneg %p207
      %p311 = scmp.lt.s32.totalorder %s24, 1
      %s312 = scalar_select %p311, %s24, 1
      %s313 = smul.addr %s312, 4
      %s314 = smul.addr %s313, 8
      %s315 = scalar_lea.vmem %s7, %s314
      %p316 = pneg %p236
      %p317 = pneg %p233
      %p318 = scmp.lt.s32.totalorder %s24, 1
      %s319 = scalar_select %p318, %s24, 1
      %s320 = smul.addr %s319, 4
      %s321 = smul.addr %s320, 8
      %s322 = scalar_lea.vmem %s8, %s321
      %p323 = scmp.lt.s32.totalorder %s24, 1
      %s324 = scalar_select %p323, %s24, 1
      %s325 = smul.addr %s324, 8
      %s326 = smul.addr %s325, 8
      %s327 = scalar_lea.vmem %s0, %s326
      %p328 = scmp.lt.s32.totalorder %s24, 1
      %s329 = scalar_select %p328, %s24, 1
      %s330 = smul.addr %s329, 8
      %s331 = smul.addr %s330, 4
      %s332 = scalar_lea.vmem %s6, %s331
      %p333 = scmp.lt.s32.totalorder %s24, 1
      %s334 = scalar_select %p333, %s24, 1
      %s335 = smul.addr %s334, 4
      %s336 = smul.addr %s335, 8
      %s337 = scalar_lea.vmem %s7, %s336
      %p338 = scmp.lt.s32.totalorder %s24, 1
      %s339 = scalar_select %p338, %s24, 1
      %s340 = smul.addr %s339, 4
      %s341 = smul.addr %s340, 8
      %s342 = scalar_lea.vmem %s8, %s341
      %p344 = scmp.eq.s32.totalorder %s25, 0
      // Predicated region
      $region45: #{oa_layer.2} parent=43 // pred_check
        %p345 = pneg %p344
      $region46: #{oa_layer.2} parent=43 // pred_check_branch
        %347 = sbr.rel (%p345) target = $region48
      $region47: #{oa_layer.2} parent=43 // pred_region
        %v348 = vld [vmem:[%s327] sm:$0xff]
        %v349 = vld [vmem:[%s327 + $0x8] sm:$0xff]
        %v350 = vld [vmem:[%s327 + $0x10] sm:$0xff]
        %v351 = vld [vmem:[%s327 + $0x18] sm:$0xff]
        %v352 = vld [vmem:[%s327 + $0x20] sm:$0xff]
        %v353 = vld [vmem:[%s327 + $0x28] sm:$0xff]
        %v354 = vld [vmem:[%s327 + $0x30] sm:$0xff]
        %v355 = vld [vmem:[%s327 + $0x38] sm:$0xff]
        %v356 = vpack.c.bf16 %v350, %v348
        %v357 = vpack.c.bf16 %v351, %v349
        %v358 = vpack.c.bf16 %v354, %v352
        %v359 = vpack.c.bf16 %v355, %v353
        %v360 = vld [vmem:[%s1] sm:$0xf]
        %vm361 = vcmask 261120
        %v363 = vsel %vm361, %v360, 0
        %365 = vmatprep.subr.bf16.mxu0 0
        %366 = vmatpush1.bf16.msra.mxu0 0
        %367 = vmatprep.subr.bf16.mxu0 0
        %368 = vmatpush1.bf16.msra.mxu0 0
        %369 = vmatprep.subr.bf16.mxu0 0
        %370 = vmatpush1.bf16.msra.mxu0 0
        %371 = vmatprep.subr.bf16.mxu0 0
        %372 = vmatpush1.bf16.msra.mxu0 0
        %373 = vmatprep.subr.bf16.mxu0 0
        %374 = vmatpush1.bf16.msra.mxu0 0
        %375 = vmatprep.subr.bf16.mxu0 0
        %376 = vmatpush1.bf16.msra.mxu0 0
        %377 = vmatprep.subr.bf16.mxu0 %v359
        %378 = vmatpush1.bf16.msra.mxu0 %v358
        %379 = vmatprep.subr.bf16.mxu0 %v357
        %380 = vmatpush1.bf16.msra.mxu0 %v356
        %381 = vmatprep.subr.bf16.mxu0 0
        %382 = vmatpush2.bf16.msra.mxu0 0
        %383 = vmatprep.subr.bf16.mxu0 0
        %384 = vmatpush2.bf16.msra.mxu0 0
        %385 = vmatprep.subr.bf16.mxu0 0
        %386 = vmatpush2.bf16.msra.mxu0 0
        %387 = vmatprep.subr.bf16.mxu0 0
        %388 = vmatpush2.bf16.msra.mxu0 0
        %389 = vmatprep.subr.bf16.mxu0 0
        %390 = vmatpush2.bf16.msra.mxu0 0
        %391 = vmatprep.subr.bf16.mxu0 0
        %392 = vmatpush2.bf16.msra.mxu0 0
        %393 = vmatprep.subr.bf16.mxu0 0
        %394 = vmatpush2.bf16.msra.mxu0 0
        %395 = vmatprep.subr.bf16.mxu0 0
        %396 = vmatpush2.bf16.msra.mxu0 0
        %397 = vmatprep.mubr.bf16.mxu0 0
        %398 = vmatmul.mubr.bf16.gmra.mxu0 %v363
        %v399 = vpop.f32.mrf.mxu0
        %v400 = vadd.f32 0.0, %v399
        %v401 = vpop.f32.mrf.mxu0
        %v402 = vadd.f32 0.0, %v401
        %v403 = vpop.f32.mrf.mxu0
        %v404 = vpop.f32.mrf.mxu0
        %405 = vdwg.mxu0
        %v406 = vpack.c.bf16 %v400, %v400
        %v407 = vpack.c.bf16 %v402, %v402
        %v410 = vunpack.c.l.b16 %v406
        %v411 = vunpack.c.l.b16 %v407
        %v412 = vpack.c.b16 %v411, %v410
        %414 = vst [vmem:[#allocation2] sm:$0xff] %v412
        %v415 = vld [vmem:[%s2] sm:$0xf]
        %v416 = vld [vmem:[%s2 + $0x4] sm:$0xf]
        %v417 = vld [vmem:[%s2 + $0x8] sm:$0xf]
        %v418 = vld [vmem:[%s2 + $0xc] sm:$0xf]
        %v419 = vld [vmem:[%s3] sm:$0xff]
        %v420 = vld [vmem:[%s3 + $0x8] sm:$0xff]
        %v421 = vld [vmem:[%s3 + $0x10] sm:$0xff]
        %v422 = vld [vmem:[%s3 + $0x18] sm:$0xff]
        %424 = vset.pattern.permute.xlu0 0
        %425 = vperm.xlu0 %424, %v419
        %v426 = vpop.permute.xlu0 %425
        %429 = vset.pattern.permute.xlu0 0
        %430 = vperm.xlu0 %429, %v420
        %v431 = vpop.permute.xlu0 %430
        %434 = vset.pattern.permute.xlu0 0
        %435 = vperm.xlu0 %434, %v421
        %v436 = vpop.permute.xlu0 %435
        %439 = vset.pattern.permute.xlu0 0
        %440 = vperm.xlu0 %439, %v422
        %v441 = vpop.permute.xlu0 %440
        %v447 = vunpack.c.l.b16 %v415
        %v448 = vunpack.c.l.b16 %v416
        %v449 = vunpack.c.l.b16 %v417
        %v450 = vunpack.c.l.b16 %v418
        %v451 = vpack.c.b16 %v448, %v447
        %v452 = vpack.c.b16 %v450, %v449
        %v454 = vsel %vm361, %v451, 0
        %v457 = vsel %vm361, %v452, 0
        %459 = vmatprep.subr.bf16.mxu0 0
        %460 = vmatpush1.bf16.msra.mxu0 0
        %461 = vmatprep.subr.bf16.mxu0 0
        %462 = vmatpush1.bf16.msra.mxu0 0
        %463 = vmatprep.subr.bf16.mxu0 0
        %464 = vmatpush1.bf16.msra.mxu0 0
        %465 = vmatprep.subr.bf16.mxu0 0
        %466 = vmatpush1.bf16.msra.mxu0 0
        %467 = vmatprep.subr.bf16.mxu0 0
        %468 = vmatpush1.bf16.msra.mxu0 0
        %469 = vmatprep.subr.bf16.mxu0 0
        %470 = vmatpush1.bf16.msra.mxu0 0
        %471 = vmatprep.subr.bf16.mxu0 %v359
        %472 = vmatpush1.bf16.msra.mxu0 %v358
        %473 = vmatprep.subr.bf16.mxu0 %v357
        %474 = vmatpush1.bf16.msra.mxu0 %v356
        %475 = vmatprep.subr.bf16.mxu0 0
        %476 = vmatpush2.bf16.msra.mxu0 0
        %477 = vmatprep.subr.bf16.mxu0 0
        %478 = vmatpush2.bf16.msra.mxu0 0
        %479 = vmatprep.subr.bf16.mxu0 0
        %480 = vmatpush2.bf16.msra.mxu0 0
        %481 = vmatprep.subr.bf16.mxu0 0
        %482 = vmatpush2.bf16.msra.mxu0 0
        %483 = vmatprep.subr.bf16.mxu0 0
        %484 = vmatpush2.bf16.msra.mxu0 0
        %485 = vmatprep.subr.bf16.mxu0 0
        %486 = vmatpush2.bf16.msra.mxu0 0
        %487 = vmatprep.subr.bf16.mxu0 0
        %488 = vmatpush2.bf16.msra.mxu0 0
        %489 = vmatprep.subr.bf16.mxu0 0
        %490 = vmatpush2.bf16.msra.mxu0 0
        %491 = vmatprep.mubr.bf16.mxu0 0
        %492 = vmatmul.mubr.bf16.gmra.mxu0 %v454
        %v493 = vpop.f32.mrf.mxu0
        %v494 = vadd.f32 %v426, %v493
        %v495 = vpop.f32.mrf.mxu0
        %v496 = vadd.f32 %v426, %v495
        %v497 = vpop.f32.mrf.mxu0
        %v498 = vadd.f32 %v431, %v497
        %v499 = vpop.f32.mrf.mxu0
        %v500 = vadd.f32 %v431, %v499
        %501 = vmatprep.mubr.bf16.mxu0 0
        %502 = vmatmul.mubr.bf16.gmra.mxu0 %v457
        %v503 = vpop.f32.mrf.mxu0
        %v504 = vadd.f32 %v436, %v503
        %v505 = vpop.f32.mrf.mxu0
        %v506 = vadd.f32 %v436, %v505
        %v507 = vpop.f32.mrf.mxu0
        %v508 = vadd.f32 %v441, %v507
        %v509 = vpop.f32.mrf.mxu0
        %v510 = vadd.f32 %v441, %v509
        %511 = vdwg.mxu0
        %v512 = vpack.c.bf16 %v498, %v494
        %v513 = vpack.c.bf16 %v500, %v496
        %v514 = vpack.c.bf16 %v508, %v504
        %v515 = vpack.c.bf16 %v510, %v506
        %v520 = vunpack.c.l.b16 %v512
        %v521 = vunpack.c.l.b16 %v513
        %v522 = vunpack.c.h.b16 %v512
        %v523 = vunpack.c.h.b16 %v513
        %v524 = vunpack.c.l.b16 %v514
        %v525 = vunpack.c.l.b16 %v515
        %v526 = vunpack.c.h.b16 %v514
        %v527 = vunpack.c.h.b16 %v515
        %v528 = vpack.c.b16 %v521, %v520
        %v529 = vpack.c.b16 %v523, %v522
        %v530 = vpack.c.b16 %v525, %v524
        %v531 = vpack.c.b16 %v527, %v526
        %536 = vst [vmem:[#allocation3] sm:$0xff] %v528
        %537 = vst [vmem:[#allocation3 + $0x8] sm:$0xff] %v529
        %538 = vst [vmem:[#allocation3 + $0x10] sm:$0xff] %v530
        %539 = vst [vmem:[#allocation3 + $0x18] sm:$0xff] %v531
        %540 = vst [vmem:[#allocation4] sm:$0xff] 0.0
        %541 = vst [vmem:[#allocation4 + $0x8] sm:$0xff] 0.0
        %542 = vst [vmem:[#allocation4 + $0x10] sm:$0xff] 0.0
        %543 = vst [vmem:[#allocation4 + $0x18] sm:$0xff] 0.0
        %544 = vst [vmem:[#allocation4 + $0x20] sm:$0xff] 0.0
        %545 = vst [vmem:[#allocation4 + $0x28] sm:$0xff] 0.0
        %546 = vst [vmem:[#allocation4 + $0x30] sm:$0xff] 0.0
        %547 = vst [vmem:[#allocation4 + $0x38] sm:$0xff] 0.0
        %v548 = vlaneseq
        %vm549 = vcmp.ge.s32.totalorder %v548, 0
        %vm550 = vcmp.lt.s32.totalorder %v548, 256
        %vm551 = vmand %vm549, %vm550
        %552 = vst.msk [vmem:[#allocation5] sm:$0x3] %vm551, 0.0
      $region48: #{oa_layer.2} parent=43 // pred_fallthru
        _
      %s553 = smul.u32 %s25, 256
      %s554 = sshra.s32 %s553, 7
      %s555 = sand.u32 %s553, 127
      %s556 = smul.addr %s554, 4
      %s557 = scalar_lea.vmem [#allocation2], %s556
      %v558 = vld [vmem:[%s557] sm:$0xff]
      %v560 = vunpack.c.l.b16 %v558
      %v561 = vunpack.c.h.b16 %v558
      %v562 = vpack.c.b16 %v560, %v560
      %v563 = vpack.c.b16 %v561, %v561
      %566 = vxpose.xlu0.c.b16.start [1/8] %v562, 128
      %567 = vxpose.xlu0.c.b16.cont [2/8] 0, 128
      %568 = vxpose.xlu0.c.b16.cont [3/8] 0, 128
      %569 = vxpose.xlu0.c.b16.cont [4/8] 0, 128
      %570 = vxpose.xlu0.c.b16.cont [5/8] 0, 128
      %571 = vxpose.xlu0.c.b16.cont [6/8] 0, 128
      %572 = vxpose.xlu0.c.b16.cont [7/8] 0, 128
      %573 = vxpose.xlu0.c.b16.end [8/8] 0, 128
      %v574 = vpop.trf.xlu0
      %v575 = vpop.trf.xlu0
      %v576 = vpop.trf.xlu0
      %v577 = vpop.trf.xlu0
      %v578 = vpop.trf.xlu0
      %v579 = vpop.trf.xlu0
      %v580 = vpop.trf.xlu0
      %v581 = vpop.trf.xlu0
      %582 = vxpose.xlu0.c.b16.start [1/8] %v563, 128
      %583 = vxpose.xlu0.c.b16.cont [2/8] 0, 128
      %584 = vxpose.xlu0.c.b16.cont [3/8] 0, 128
      %585 = vxpose.xlu0.c.b16.cont [4/8] 0, 128
      %586 = vxpose.xlu0.c.b16.cont [5/8] 0, 128
      %587 = vxpose.xlu0.c.b16.cont [6/8] 0, 128
      %588 = vxpose.xlu0.c.b16.cont [7/8] 0, 128
      %589 = vxpose.xlu0.c.b16.end [8/8] 0, 128
      %v590 = vpop.trf.xlu0
      %v591 = vpop.trf.xlu0
      %v592 = vpop.trf.xlu0
      %v593 = vpop.trf.xlu0
      %v594 = vpop.trf.xlu0
      %v595 = vpop.trf.xlu0
      %v596 = vpop.trf.xlu0
      %v597 = vpop.trf.xlu0
      %v598 = vld [vmem:[#allocation2] sm:$0xff]
      %v600 = vunpack.c.l.b16 %v598
      %v601 = vunpack.c.h.b16 %v598
      %v602 = vpack.c.b16 %v600, %v600
      %v603 = vpack.c.b16 %v601, %v601
      %vm604 = vcmask 64512
      %v606 = vsel %vm604, %v574, 0
      %v609 = vsel %vm604, %v575, 0
      %v612 = vsel %vm604, %v576, 0
      %v615 = vsel %vm604, %v577, 0
      %v618 = vsel %vm604, %v578, 0
      %v621 = vsel %vm604, %v579, 0
      %v624 = vsel %vm604, %v580, 0
      %v627 = vsel %vm604, %v581, 0
      %v630 = vsel %vm604, %v590, 0
      %v633 = vsel %vm604, %v591, 0
      %v636 = vsel %vm604, %v592, 0
      %v639 = vsel %vm604, %v593, 0
      %v642 = vsel %vm604, %v594, 0
      %v645 = vsel %vm604, %v595, 0
      %v648 = vsel %vm604, %v596, 0
      %v651 = vsel %vm604, %v597, 0
      %vm653 = vcmask 1043456
      %v655 = vsel %vm653, %v602, 0
      %v658 = vsel %vm653, %v603, 0
      %660 = vmatprep.subr.bf16.mxu0 0
      %661 = vmatpush1.bf16.msra.mxu0 0
      %662 = vmatprep.subr.bf16.mxu0 0
      %663 = vmatpush1.bf16.msra.mxu0 0
      %664 = vmatprep.subr.bf16.mxu0 0
      %665 = vmatpush1.bf16.msra.mxu0 0
      %666 = vmatprep.subr.bf16.mxu0 0
      %667 = vmatpush1.bf16.msra.mxu0 0
      %668 = vmatprep.subr.bf16.mxu0 0
      %669 = vmatpush1.bf16.msra.mxu0 0
      %670 = vmatprep.subr.bf16.mxu0 0
      %671 = vmatpush1.bf16.msra.mxu0 0
      %672 = vmatprep.subr.bf16.mxu0 0
      %673 = vmatpush1.bf16.msra.mxu0 0
      %674 = vmatprep.subr.bf16.mxu0 %v658
      %675 = vmatpush1.bf16.msra.mxu0 %v655
      %676 = vmatprep.subr.bf16.mxu0 0
      %677 = vmatpush2.bf16.msra.mxu0 0
      %678 = vmatprep.subr.bf16.mxu0 0
      %679 = vmatpush2.bf16.msra.mxu0 0
      %680 = vmatprep.subr.bf16.mxu0 0
      %681 = vmatpush2.bf16.msra.mxu0 0
      %682 = vmatprep.subr.bf16.mxu0 0
      %683 = vmatpush2.bf16.msra.mxu0 0
      %684 = vmatprep.subr.bf16.mxu0 0
      %685 = vmatpush2.bf16.msra.mxu0 0
      %686 = vmatprep.subr.bf16.mxu0 0
      %687 = vmatpush2.bf16.msra.mxu0 0
      %688 = vmatprep.subr.bf16.mxu0 0
      %689 = vmatpush2.bf16.msra.mxu0 0
      %690 = vmatprep.subr.bf16.mxu0 0
      %691 = vmatpush2.bf16.msra.mxu0 0
      %692 = vmatprep.mubr.bf16.mxu0 0
      %693 = vmatmul.mubr.bf16.gmra.mxu0 %v606
      %v694 = vpop.f32.mrf.mxu0
      %v695 = vadd.f32 0.0, %v694
      %v696 = vpop.f32.mrf.mxu0
      %v697 = vadd.f32 0.0, %v696
      %v698 = vpop.f32.mrf.mxu0
      %v699 = vadd.f32 0.0, %v698
      %v700 = vpop.f32.mrf.mxu0
      %v701 = vadd.f32 0.0, %v700
      %702 = vmatprep.mubr.bf16.mxu0 0
      %703 = vmatmul.mubr.bf16.gmra.mxu0 %v609
      %v704 = vpop.f32.mrf.mxu0
      %v705 = vadd.f32 0.0, %v704
      %v706 = vpop.f32.mrf.mxu0
      %v707 = vadd.f32 0.0, %v706
      %v708 = vpop.f32.mrf.mxu0
      %v709 = vadd.f32 0.0, %v708
      %v710 = vpop.f32.mrf.mxu0
      %v711 = vadd.f32 0.0, %v710
      %712 = vmatprep.mubr.bf16.mxu0 0
      %713 = vmatmul.mubr.bf16.gmra.mxu0 %v612
      %v714 = vpop.f32.mrf.mxu0
      %v715 = vadd.f32 0.0, %v714
      %v716 = vpop.f32.mrf.mxu0
      %v717 = vadd.f32 0.0, %v716
      %v718 = vpop.f32.mrf.mxu0
      %v719 = vadd.f32 0.0, %v718
      %v720 = vpop.f32.mrf.mxu0
      %v721 = vadd.f32 0.0, %v720
      %722 = vmatprep.mubr.bf16.mxu0 0
      %723 = vmatmul.mubr.bf16.gmra.mxu0 %v615
      %v724 = vpop.f32.mrf.mxu0
      %v725 = vadd.f32 0.0, %v724
      %v726 = vpop.f32.mrf.mxu0
      %v727 = vadd.f32 0.0, %v726
      %v728 = vpop.f32.mrf.mxu0
      %v729 = vadd.f32 0.0, %v728
      %v730 = vpop.f32.mrf.mxu0
      %v731 = vadd.f32 0.0, %v730
      %732 = vmatprep.mubr.bf16.mxu0 0
      %733 = vmatmul.mubr.bf16.gmra.mxu0 %v618
      %v734 = vpop.f32.mrf.mxu0
      %v735 = vadd.f32 0.0, %v734
      %v736 = vpop.f32.mrf.mxu0
      %v737 = vadd.f32 0.0, %v736
      %v738 = vpop.f32.mrf.mxu0
      %v739 = vadd.f32 0.0, %v738
      %v740 = vpop.f32.mrf.mxu0
      %v741 = vadd.f32 0.0, %v740
      %742 = vmatprep.mubr.bf16.mxu0 0
      %743 = vmatmul.mubr.bf16.gmra.mxu0 %v621
      %v744 = vpop.f32.mrf.mxu0
      %v745 = vadd.f32 0.0, %v744
      %v746 = vpop.f32.mrf.mxu0
      %v747 = vadd.f32 0.0, %v746
      %v748 = vpop.f32.mrf.mxu0
      %v749 = vadd.f32 0.0, %v748
      %v750 = vpop.f32.mrf.mxu0
      %v751 = vadd.f32 0.0, %v750
      %752 = vmatprep.mubr.bf16.mxu0 0
      %753 = vmatmul.mubr.bf16.gmra.mxu0 %v624
      %v754 = vpop.f32.mrf.mxu0
      %v755 = vadd.f32 0.0, %v754
      %v756 = vpop.f32.mrf.mxu0
      %v757 = vadd.f32 0.0, %v756
      %v758 = vpop.f32.mrf.mxu0
      %v759 = vadd.f32 0.0, %v758
      %v760 = vpop.f32.mrf.mxu0
      %v761 = vadd.f32 0.0, %v760
      %762 = vmatprep.mubr.bf16.mxu0 0
      %763 = vmatmul.mubr.bf16.gmra.mxu0 %v627
      %v764 = vpop.f32.mrf.mxu0
      %v765 = vadd.f32 0.0, %v764
      %v766 = vpop.f32.mrf.mxu0
      %v767 = vadd.f32 0.0, %v766
      %v768 = vpop.f32.mrf.mxu0
      %v769 = vadd.f32 0.0, %v768
      %v770 = vpop.f32.mrf.mxu0
      %v771 = vadd.f32 0.0, %v770
      %772 = vmatprep.mubr.bf16.mxu0 0
      %773 = vmatmul.mubr.bf16.gmra.mxu0 %v630
      %v774 = vpop.f32.mrf.mxu0
      %v775 = vadd.f32 0.0, %v774
      %v776 = vpop.f32.mrf.mxu0
      %v777 = vadd.f32 0.0, %v776
      %v778 = vpop.f32.mrf.mxu0
      %v779 = vadd.f32 0.0, %v778
      %v780 = vpop.f32.mrf.mxu0
      %v781 = vadd.f32 0.0, %v780
      %782 = vmatprep.mubr.bf16.mxu0 0
      %783 = vmatmul.mubr.bf16.gmra.mxu0 %v633
      %v784 = vpop.f32.mrf.mxu0
      %v785 = vadd.f32 0.0, %v784
      %v786 = vpop.f32.mrf.mxu0
      %v787 = vadd.f32 0.0, %v786
      %v788 = vpop.f32.mrf.mxu0
      %v789 = vadd.f32 0.0, %v788
      %v790 = vpop.f32.mrf.mxu0
      %v791 = vadd.f32 0.0, %v790
      %792 = vmatprep.mubr.bf16.mxu0 0
      %793 = vmatmul.mubr.bf16.gmra.mxu0 %v636
      %v794 = vpop.f32.mrf.mxu0
      %v795 = vadd.f32 0.0, %v794
      %v796 = vpop.f32.mrf.mxu0
      %v797 = vadd.f32 0.0, %v796
      %v798 = vpop.f32.mrf.mxu0
      %v799 = vadd.f32 0.0, %v798
      %v800 = vpop.f32.mrf.mxu0
      %v801 = vadd.f32 0.0, %v800
      %802 = vmatprep.mubr.bf16.mxu0 0
      %803 = vmatmul.mubr.bf16.gmra.mxu0 %v639
      %v804 = vpop.f32.mrf.mxu0
      %v805 = vadd.f32 0.0, %v804
      %v806 = vpop.f32.mrf.mxu0
      %v807 = vadd.f32 0.0, %v806
      %v808 = vpop.f32.mrf.mxu0
      %v809 = vadd.f32 0.0, %v808
      %v810 = vpop.f32.mrf.mxu0
      %v811 = vadd.f32 0.0, %v810
      %812 = vmatprep.mubr.bf16.mxu0 0
      %813 = vmatmul.mubr.bf16.gmra.mxu0 %v642
      %v814 = vpop.f32.mrf.mxu0
      %v815 = vadd.f32 0.0, %v814
      %v816 = vpop.f32.mrf.mxu0
      %v817 = vadd.f32 0.0, %v816
      %v818 = vpop.f32.mrf.mxu0
      %v819 = vadd.f32 0.0, %v818
      %v820 = vpop.f32.mrf.mxu0
      %v821 = vadd.f32 0.0, %v820
      %822 = vmatprep.mubr.bf16.mxu0 0
      %823 = vmatmul.mubr.bf16.gmra.mxu0 %v645
      %v824 = vpop.f32.mrf.mxu0
      %v825 = vadd.f32 0.0, %v824
      %v826 = vpop.f32.mrf.mxu0
      %v827 = vadd.f32 0.0, %v826
      %v828 = vpop.f32.mrf.mxu0
      %v829 = vadd.f32 0.0, %v828
      %v830 = vpop.f32.mrf.mxu0
      %v831 = vadd.f32 0.0, %v830
      %832 = vmatprep.mubr.bf16.mxu0 0
      %833 = vmatmul.mubr.bf16.gmra.mxu0 %v648
      %v834 = vpop.f32.mrf.mxu0
      %v835 = vadd.f32 0.0, %v834
      %v836 = vpop.f32.mrf.mxu0
      %v837 = vadd.f32 0.0, %v836
      %v838 = vpop.f32.mrf.mxu0
      %v839 = vadd.f32 0.0, %v838
      %v840 = vpop.f32.mrf.mxu0
      %v841 = vadd.f32 0.0, %v840
      %842 = vmatprep.mubr.bf16.mxu0 0
      %843 = vmatmul.mubr.bf16.gmra.mxu0 %v651
      %v844 = vpop.f32.mrf.mxu0
      %v845 = vadd.f32 0.0, %v844
      %v846 = vpop.f32.mrf.mxu0
      %v847 = vadd.f32 0.0, %v846
      %v848 = vpop.f32.mrf.mxu0
      %v849 = vadd.f32 0.0, %v848
      %v850 = vpop.f32.mrf.mxu0
      %v851 = vadd.f32 0.0, %v850
      %852 = vdwg.mxu0
      %v853 = vmax.f32 %v695, %v697
      %854 = vmax.xlane.f32.xlu0 %v853
      %v855 = vpop.xlane.xlu0 %854
      %v856 = vmax.f32 %v699, %v701
      %857 = vmax.xlane.f32.xlu0 %v856
      %v858 = vpop.xlane.xlu0 %857
      %v859 = vmax.f32 %v705, %v707
      %860 = vmax.xlane.f32.xlu0 %v859
      %v861 = vpop.xlane.xlu0 %860
      %v862 = vmax.f32 %v709, %v711
      %863 = vmax.xlane.f32.xlu0 %v862
      %v864 = vpop.xlane.xlu0 %863
      %v865 = vmax.f32 %v715, %v717
      %866 = vmax.xlane.f32.xlu0 %v865
      %v867 = vpop.xlane.xlu0 %866
      %v868 = vmax.f32 %v719, %v721
      %869 = vmax.xlane.f32.xlu0 %v868
      %v870 = vpop.xlane.xlu0 %869
      %v871 = vmax.f32 %v725, %v727
      %872 = vmax.xlane.f32.xlu0 %v871
      %v873 = vpop.xlane.xlu0 %872
      %v874 = vmax.f32 %v729, %v731
      %875 = vmax.xlane.f32.xlu0 %v874
      %v876 = vpop.xlane.xlu0 %875
      %v877 = vmax.f32 %v735, %v737
      %878 = vmax.xlane.f32.xlu0 %v877
      %v879 = vpop.xlane.xlu0 %878
      %v880 = vmax.f32 %v739, %v741
      %881 = vmax.xlane.f32.xlu0 %v880
      %v882 = vpop.xlane.xlu0 %881
      %v883 = vmax.f32 %v745, %v747
      %884 = vmax.xlane.f32.xlu0 %v883
      %v885 = vpop.xlane.xlu0 %884
      %v886 = vmax.f32 %v749, %v751
      %887 = vmax.xlane.f32.xlu0 %v886
      %v888 = vpop.xlane.xlu0 %887
      %v889 = vmax.f32 %v755, %v757
      %890 = vmax.xlane.f32.xlu0 %v889
      %v891 = vpop.xlane.xlu0 %890
      %v892 = vmax.f32 %v759, %v761
      %893 = vmax.xlane.f32.xlu0 %v892
      %v894 = vpop.xlane.xlu0 %893
      %v895 = vmax.f32 %v765, %v767
      %896 = vmax.xlane.f32.xlu0 %v895
      %v897 = vpop.xlane.xlu0 %896
      %v898 = vmax.f32 %v769, %v771
      %899 = vmax.xlane.f32.xlu0 %v898
      %v900 = vpop.xlane.xlu0 %899
      %v901 = vmax.f32 %v775, %v777
      %902 = vmax.xlane.f32.xlu0 %v901
      %v903 = vpop.xlane.xlu0 %902
      %v904 = vmax.f32 %v779, %v781
      %905 = vmax.xlane.f32.xlu0 %v904
      %v906 = vpop.xlane.xlu0 %905
      %v907 = vmax.f32 %v785, %v787
      %908 = vmax.xlane.f32.xlu0 %v907
      %v909 = vpop.xlane.xlu0 %908
      %v910 = vmax.f32 %v789, %v791
      %911 = vmax.xlane.f32.xlu0 %v910
      %v912 = vpop.xlane.xlu0 %911
      %v913 = vmax.f32 %v795, %v797
      %914 = vmax.xlane.f32.xlu0 %v913
      %v915 = vpop.xlane.xlu0 %914
      %v916 = vmax.f32 %v799, %v801
      %917 = vmax.xlane.f32.xlu0 %v916
      %v918 = vpop.xlane.xlu0 %917
      %v919 = vmax.f32 %v805, %v807
      %920 = vmax.xlane.f32.xlu0 %v919
      %v921 = vpop.xlane.xlu0 %920
      %v922 = vmax.f32 %v809, %v811
      %923 = vmax.xlane.f32.xlu0 %v922
      %v924 = vpop.xlane.xlu0 %923
      %v925 = vmax.f32 %v815, %v817
      %926 = vmax.xlane.f32.xlu0 %v925
      %v927 = vpop.xlane.xlu0 %926
      %v928 = vmax.f32 %v819, %v821
      %929 = vmax.xlane.f32.xlu0 %v928
      %v930 = vpop.xlane.xlu0 %929
      %v931 = vmax.f32 %v825, %v827
      %932 = vmax.xlane.f32.xlu0 %v931
      %v933 = vpop.xlane.xlu0 %932
      %v934 = vmax.f32 %v829, %v831
      %935 = vmax.xlane.f32.xlu0 %v934
      %v936 = vpop.xlane.xlu0 %935
      %v937 = vmax.f32 %v835, %v837
      %938 = vmax.xlane.f32.xlu0 %v937
      %v939 = vpop.xlane.xlu0 %938
      %v940 = vmax.f32 %v839, %v841
      %941 = vmax.xlane.f32.xlu0 %v940
      %v942 = vpop.xlane.xlu0 %941
      %v943 = vmax.f32 %v845, %v847
      %944 = vmax.xlane.f32.xlu0 %v943
      %v945 = vpop.xlane.xlu0 %944
      %v946 = vmax.f32 %v849, %v851
      %947 = vmax.xlane.f32.xlu0 %v946
      %v948 = vpop.xlane.xlu0 %947
      %v949 = vsub.f32 %v695, %v855
      %v950 = vsub.f32 %v697, %v855
      %v951 = vsub.f32 %v699, %v858
      %v952 = vsub.f32 %v701, %v858
      %v953 = vsub.f32 %v705, %v861
      %v954 = vsub.f32 %v707, %v861
      %v955 = vsub.f32 %v709, %v864
      %v956 = vsub.f32 %v711, %v864
      %v957 = vsub.f32 %v715, %v867
      %v958 = vsub.f32 %v717, %v867
      %v959 = vsub.f32 %v719, %v870
      %v960 = vsub.f32 %v721, %v870
      %v961 = vsub.f32 %v725, %v873
      %v962 = vsub.f32 %v727, %v873
      %v963 = vsub.f32 %v729, %v876
      %v964 = vsub.f32 %v731, %v876
      %v965 = vsub.f32 %v735, %v879
      %v966 = vsub.f32 %v737, %v879
      %v967 = vsub.f32 %v739, %v882
      %v968 = vsub.f32 %v741, %v882
      %v969 = vsub.f32 %v745, %v885
      %v970 = vsub.f32 %v747, %v885
      %v971 = vsub.f32 %v749, %v888
      %v972 = vsub.f32 %v751, %v888
      %v973 = vsub.f32 %v755, %v891
      %v974 = vsub.f32 %v757, %v891
      %v975 = vsub.f32 %v759, %v894
      %v976 = vsub.f32 %v761, %v894
      %v977 = vsub.f32 %v765, %v897
      %v978 = vsub.f32 %v767, %v897
      %v979 = vsub.f32 %v769, %v900
      %v980 = vsub.f32 %v771, %v900
      %v981 = vsub.f32 %v775, %v903
      %v982 = vsub.f32 %v777, %v903
      %v983 = vsub.f32 %v779, %v906
      %v984 = vsub.f32 %v781, %v906
      %v985 = vsub.f32 %v785, %v909
      %v986 = vsub.f32 %v787, %v909
      %v987 = vsub.f32 %v789, %v912
      %v988 = vsub.f32 %v791, %v912
      %v989 = vsub.f32 %v795, %v915
      %v990 = vsub.f32 %v797, %v915
      %v991 = vsub.f32 %v799, %v918
      %v992 = vsub.f32 %v801, %v918
      %v993 = vsub.f32 %v805, %v921
      %v994 = vsub.f32 %v807, %v921
      %v995 = vsub.f32 %v809, %v924
      %v996 = vsub.f32 %v811, %v924
      %v997 = vsub.f32 %v815, %v927
      %v998 = vsub.f32 %v817, %v927
      %v999 = vsub.f32 %v819, %v930
      %v1000 = vsub.f32 %v821, %v930
      %v1001 = vsub.f32 %v825, %v933
      %v1002 = vsub.f32 %v827, %v933
      %v1003 = vsub.f32 %v829, %v936
      %v1004 = vsub.f32 %v831, %v936
      %v1005 = vsub.f32 %v835, %v939
      %v1006 = vsub.f32 %v837, %v939
      %v1007 = vsub.f32 %v839, %v942
      %v1008 = vsub.f32 %v841, %v942
      %v1009 = vsub.f32 %v845, %v945
      %v1010 = vsub.f32 %v847, %v945
      %v1011 = vsub.f32 %v849, %v948
      %v1012 = vsub.f32 %v851, %v948
      %v1013 = vmul.f32 %v949, 1.442695
      %v1014 = vpow.pop %v1013
      %v1015 = vmul.f32 %v950, 1.442695
      %v1016 = vpow.pop %v1015
      %v1017 = vmul.f32 %v951, 1.442695
      %v1018 = vpow.pop %v1017
      %v1019 = vmul.f32 %v952, 1.442695
      %v1020 = vpow.pop %v1019
      %v1021 = vmul.f32 %v953, 1.442695
      %v1022 = vpow.pop %v1021
      %v1023 = vmul.f32 %v954, 1.442695
      %v1024 = vpow.pop %v1023
      %v1025 = vmul.f32 %v955, 1.442695
      %v1026 = vpow.pop %v1025
      %v1027 = vmul.f32 %v956, 1.442695
      %v1028 = vpow.pop %v1027
      %v1029 = vmul.f32 %v957, 1.442695
      %v1030 = vpow.pop %v1029
      %v1031 = vmul.f32 %v958, 1.442695
      %v1032 = vpow.pop %v1031
      %v1033 = vmul.f32 %v959, 1.442695
      %v1034 = vpow.pop %v1033
      %v1035 = vmul.f32 %v960, 1.442695
      %v1036 = vpow.pop %v1035
      %v1037 = vmul.f32 %v961, 1.442695
      %v1038 = vpow.pop %v1037
      %v1039 = vmul.f32 %v962, 1.442695
      %v1040 = vpow.pop %v1039
      %v1041 = vmul.f32 %v963, 1.442695
      %v1042 = vpow.pop %v1041
      %v1043 = vmul.f32 %v964, 1.442695
      %v1044 = vpow.pop %v1043
      %v1045 = vmul.f32 %v965, 1.442695
      %v1046 = vpow.pop %v1045
      %v1047 = vmul.f32 %v966, 1.442695
      %v1048 = vpow.pop %v1047
      %v1049 = vmul.f32 %v967, 1.442695
      %v1050 = vpow.pop %v1049
      %v1051 = vmul.f32 %v968, 1.442695
      %v1052 = vpow.pop %v1051
      %v1053 = vmul.f32 %v969, 1.442695
      %v1054 = vpow.pop %v1053
      %v1055 = vmul.f32 %v970, 1.442695
      %v1056 = vpow.pop %v1055
      %v1057 = vmul.f32 %v971, 1.442695
      %v1058 = vpow.pop %v1057
      %v1059 = vmul.f32 %v972, 1.442695
      %v1060 = vpow.pop %v1059
      %v1061 = vmul.f32 %v973, 1.442695
      %v1062 = vpow.pop %v1061
      %v1063 = vmul.f32 %v974, 1.442695
      %v1064 = vpow.pop %v1063
      %v1065 = vmul.f32 %v975, 1.442695
      %v1066 = vpow.pop %v1065
      %v1067 = vmul.f32 %v976, 1.442695
      %v1068 = vpow.pop %v1067
      %v1069 = vmul.f32 %v977, 1.442695
      %v1070 = vpow.pop %v1069
      %v1071 = vmul.f32 %v978, 1.442695
      %v1072 = vpow.pop %v1071
      %v1073 = vmul.f32 %v979, 1.442695
      %v1074 = vpow.pop %v1073
      %v1075 = vmul.f32 %v980, 1.442695
      %v1076 = vpow.pop %v1075
      %v1077 = vmul.f32 %v981, 1.442695
      %v1078 = vpow.pop %v1077
      %v1079 = vmul.f32 %v982, 1.442695
      %v1080 = vpow.pop %v1079
      %v1081 = vmul.f32 %v983, 1.442695
      %v1082 = vpow.pop %v1081
      %v1083 = vmul.f32 %v984, 1.442695
      %v1084 = vpow.pop %v1083
      %v1085 = vmul.f32 %v985, 1.442695
      %v1086 = vpow.pop %v1085
      %v1087 = vmul.f32 %v986, 1.442695
      %v1088 = vpow.pop %v1087
      %v1089 = vmul.f32 %v987, 1.442695
      %v1090 = vpow.pop %v1089
      %v1091 = vmul.f32 %v988, 1.442695
      %v1092 = vpow.pop %v1091
      %v1093 = vmul.f32 %v989, 1.442695
      %v1094 = vpow.pop %v1093
      %v1095 = vmul.f32 %v990, 1.442695
      %v1096 = vpow.pop %v1095
      %v1097 = vmul.f32 %v991, 1.442695
      %v1098 = vpow.pop %v1097
      %v1099 = vmul.f32 %v992, 1.442695
      %v1100 = vpow.pop %v1099
      %v1101 = vmul.f32 %v993, 1.442695
      %v1102 = vpow.pop %v1101
      %v1103 = vmul.f32 %v994, 1.442695
      %v1104 = vpow.pop %v1103
      %v1105 = vmul.f32 %v995, 1.442695
      %v1106 = vpow.pop %v1105
      %v1107 = vmul.f32 %v996, 1.442695
      %v1108 = vpow.pop %v1107
      %v1109 = vmul.f32 %v997, 1.442695
      %v1110 = vpow.pop %v1109
      %v1111 = vmul.f32 %v998, 1.442695
      %v1112 = vpow.pop %v1111
      %v1113 = vmul.f32 %v999, 1.442695
      %v1114 = vpow.pop %v1113
      %v1115 = vmul.f32 %v1000, 1.442695
      %v1116 = vpow.pop %v1115
      %v1117 = vmul.f32 %v1001, 1.442695
      %v1118 = vpow.pop %v1117
      %v1119 = vmul.f32 %v1002, 1.442695
      %v1120 = vpow.pop %v1119
      %v1121 = vmul.f32 %v1003, 1.442695
      %v1122 = vpow.pop %v1121
      %v1123 = vmul.f32 %v1004, 1.442695
      %v1124 = vpow.pop %v1123
      %v1125 = vmul.f32 %v1005, 1.442695
      %v1126 = vpow.pop %v1125
      %v1127 = vmul.f32 %v1006, 1.442695
      %v1128 = vpow.pop %v1127
      %v1129 = vmul.f32 %v1007, 1.442695
      %v1130 = vpow.pop %v1129
      %v1131 = vmul.f32 %v1008, 1.442695
      %v1132 = vpow.pop %v1131
      %v1133 = vmul.f32 %v1009, 1.442695
      %v1134 = vpow.pop %v1133
      %v1135 = vmul.f32 %v1010, 1.442695
      %v1136 = vpow.pop %v1135
      %v1137 = vmul.f32 %v1011, 1.442695
      %v1138 = vpow.pop %v1137
      %v1139 = vmul.f32 %v1012, 1.442695
      %v1140 = vpow.pop %v1139
      %v1141 = vadd.f32 %v1014, %v1016
      %1142 = vadd.xlane.f32.xlu0 %v1141
      %v1143 = vpop.xlane.xlu0 %1142
      %v1144 = vadd.f32 %v1018, %v1020
      %1145 = vadd.xlane.f32.xlu0 %v1144
      %v1146 = vpop.xlane.xlu0 %1145
      %v1147 = vadd.f32 %v1022, %v1024
      %1148 = vadd.xlane.f32.xlu0 %v1147
      %v1149 = vpop.xlane.xlu0 %1148
      %v1150 = vadd.f32 %v1026, %v1028
      %1151 = vadd.xlane.f32.xlu0 %v1150
      %v1152 = vpop.xlane.xlu0 %1151
      %v1153 = vadd.f32 %v1030, %v1032
      %1154 = vadd.xlane.f32.xlu0 %v1153
      %v1155 = vpop.xlane.xlu0 %1154
      %v1156 = vadd.f32 %v1034, %v1036
      %1157 = vadd.xlane.f32.xlu0 %v1156
      %v1158 = vpop.xlane.xlu0 %1157
      %v1159 = vadd.f32 %v1038, %v1040
      %1160 = vadd.xlane.f32.xlu0 %v1159
      %v1161 = vpop.xlane.xlu0 %1160
      %v1162 = vadd.f32 %v1042, %v1044
      %1163 = vadd.xlane.f32.xlu0 %v1162
      %v1164 = vpop.xlane.xlu0 %1163
      %v1165 = vadd.f32 %v1046, %v1048
      %1166 = vadd.xlane.f32.xlu0 %v1165
      %v1167 = vpop.xlane.xlu0 %1166
      %v1168 = vadd.f32 %v1050, %v1052
      %1169 = vadd.xlane.f32.xlu0 %v1168
      %v1170 = vpop.xlane.xlu0 %1169
      %v1171 = vadd.f32 %v1054, %v1056
      %1172 = vadd.xlane.f32.xlu0 %v1171
      %v1173 = vpop.xlane.xlu0 %1172
      %v1174 = vadd.f32 %v1058, %v1060
      %1175 = vadd.xlane.f32.xlu0 %v1174
      %v1176 = vpop.xlane.xlu0 %1175
      %v1177 = vadd.f32 %v1062, %v1064
      %1178 = vadd.xlane.f32.xlu0 %v1177
      %v1179 = vpop.xlane.xlu0 %1178
      %v1180 = vadd.f32 %v1066, %v1068
      %1181 = vadd.xlane.f32.xlu0 %v1180
      %v1182 = vpop.xlane.xlu0 %1181
      %v1183 = vadd.f32 %v1070, %v1072
      %1184 = vadd.xlane.f32.xlu0 %v1183
      %v1185 = vpop.xlane.xlu0 %1184
      %v1186 = vadd.f32 %v1074, %v1076
      %1187 = vadd.xlane.f32.xlu0 %v1186
      %v1188 = vpop.xlane.xlu0 %1187
      %v1189 = vadd.f32 %v1078, %v1080
      %1190 = vadd.xlane.f32.xlu0 %v1189
      %v1191 = vpop.xlane.xlu0 %1190
      %v1192 = vadd.f32 %v1082, %v1084
      %1193 = vadd.xlane.f32.xlu0 %v1192
      %v1194 = vpop.xlane.xlu0 %1193
      %v1195 = vadd.f32 %v1086, %v1088
      %1196 = vadd.xlane.f32.xlu0 %v1195
      %v1197 = vpop.xlane.xlu0 %1196
      %v1198 = vadd.f32 %v1090, %v1092
      %1199 = vadd.xlane.f32.xlu0 %v1198
      %v1200 = vpop.xlane.xlu0 %1199
      %v1201 = vadd.f32 %v1094, %v1096
      %1202 = vadd.xlane.f32.xlu0 %v1201
      %v1203 = vpop.xlane.xlu0 %1202
      %v1204 = vadd.f32 %v1098, %v1100
      %1205 = vadd.xlane.f32.xlu0 %v1204
      %v1206 = vpop.xlane.xlu0 %1205
      %v1207 = vadd.f32 %v1102, %v1104
      %1208 = vadd.xlane.f32.xlu0 %v1207
      %v1209 = vpop.xlane.xlu0 %1208
      %v1210 = vadd.f32 %v1106, %v1108
      %1211 = vadd.xlane.f32.xlu0 %v1210
      %v1212 = vpop.xlane.xlu0 %1211
      %v1213 = vadd.f32 %v1110, %v1112
      %1214 = vadd.xlane.f32.xlu0 %v1213
      %v1215 = vpop.xlane.xlu0 %1214
      %v1216 = vadd.f32 %v1114, %v1116
      %1217 = vadd.xlane.f32.xlu0 %v1216
      %v1218 = vpop.xlane.xlu0 %1217
      %v1219 = vadd.f32 %v1118, %v1120
      %1220 = vadd.xlane.f32.xlu0 %v1219
      %v1221 = vpop.xlane.xlu0 %1220
      %v1222 = vadd.f32 %v1122, %v1124
      %1223 = vadd.xlane.f32.xlu0 %v1222
      %v1224 = vpop.xlane.xlu0 %1223
      %v1225 = vadd.f32 %v1126, %v1128
      %1226 = vadd.xlane.f32.xlu0 %v1225
      %v1227 = vpop.xlane.xlu0 %1226
      %v1228 = vadd.f32 %v1130, %v1132
      %1229 = vadd.xlane.f32.xlu0 %v1228
      %v1230 = vpop.xlane.xlu0 %1229
      %v1231 = vadd.f32 %v1134, %v1136
      %1232 = vadd.xlane.f32.xlu0 %v1231
      %v1233 = vpop.xlane.xlu0 %1232
      %v1234 = vadd.f32 %v1138, %v1140
      %1235 = vadd.xlane.f32.xlu0 %v1234
      %v1236 = vpop.xlane.xlu0 %1235
      %v1237 = vrcp.pop %v1143
      %v1238 = vrcp.pop %v1146
      %v1239 = vrcp.pop %v1149
      %v1240 = vrcp.pop %v1152
      %v1241 = vrcp.pop %v1155
      %v1242 = vrcp.pop %v1158
      %v1243 = vrcp.pop %v1161
      %v1244 = vrcp.pop %v1164
      %v1245 = vrcp.pop %v1167
      %v1246 = vrcp.pop %v1170
      %v1247 = vrcp.pop %v1173
      %v1248 = vrcp.pop %v1176
      %v1249 = vrcp.pop %v1179
      %v1250 = vrcp.pop %v1182
      %v1251 = vrcp.pop %v1185
      %v1252 = vrcp.pop %v1188
      %v1253 = vrcp.pop %v1191
      %v1254 = vrcp.pop %v1194
      %v1255 = vrcp.pop %v1197
      %v1256 = vrcp.pop %v1200
      %v1257 = vrcp.pop %v1203
      %v1258 = vrcp.pop %v1206
      %v1259 = vrcp.pop %v1209
      %v1260 = vrcp.pop %v1212
      %v1261 = vrcp.pop %v1215
      %v1262 = vrcp.pop %v1218
      %v1263 = vrcp.pop %v1221
      %v1264 = vrcp.pop %v1224
      %v1265 = vrcp.pop %v1227
      %v1266 = vrcp.pop %v1230
      %v1267 = vrcp.pop %v1233
      %v1268 = vrcp.pop %v1236
      %v1269 = vmul.f32 %v1014, %v1237
      %v1270 = vmul.f32 %v1016, %v1237
      %v1271 = vmul.f32 %v1018, %v1238
      %v1272 = vmul.f32 %v1020, %v1238
      %v1273 = vmul.f32 %v1022, %v1239
      %v1274 = vmul.f32 %v1024, %v1239
      %v1275 = vmul.f32 %v1026, %v1240
      %v1276 = vmul.f32 %v1028, %v1240
      %v1277 = vmul.f32 %v1030, %v1241
      %v1278 = vmul.f32 %v1032, %v1241
      %v1279 = vmul.f32 %v1034, %v1242
      %v1280 = vmul.f32 %v1036, %v1242
      %v1281 = vmul.f32 %v1038, %v1243
      %v1282 = vmul.f32 %v1040, %v1243
      %v1283 = vmul.f32 %v1042, %v1244
      %v1284 = vmul.f32 %v1044, %v1244
      %v1285 = vmul.f32 %v1046, %v1245
      %v1286 = vmul.f32 %v1048, %v1245
      %v1287 = vmul.f32 %v1050, %v1246
      %v1288 = vmul.f32 %v1052, %v1246
      %v1289 = vmul.f32 %v1054, %v1247
      %v1290 = vmul.f32 %v1056, %v1247
      %v1291 = vmul.f32 %v1058, %v1248
      %v1292 = vmul.f32 %v1060, %v1248
      %v1293 = vmul.f32 %v1062, %v1249
      %v1294 = vmul.f32 %v1064, %v1249
      %v1295 = vmul.f32 %v1066, %v1250
      %v1296 = vmul.f32 %v1068, %v1250
      %v1297 = vmul.f32 %v1070, %v1251
      %v1298 = vmul.f32 %v1072, %v1251
      %v1299 = vmul.f32 %v1074, %v1252
      %v1300 = vmul.f32 %v1076, %v1252
      %v1301 = vmul.f32 %v1078, %v1253
      %v1302 = vmul.f32 %v1080, %v1253
      %v1303 = vmul.f32 %v1082, %v1254
      %v1304 = vmul.f32 %v1084, %v1254
      %v1305 = vmul.f32 %v1086, %v1255
      %v1306 = vmul.f32 %v1088, %v1255
      %v1307 = vmul.f32 %v1090, %v1256
      %v1308 = vmul.f32 %v1092, %v1256
      %v1309 = vmul.f32 %v1094, %v1257
      %v1310 = vmul.f32 %v1096, %v1257
      %v1311 = vmul.f32 %v1098, %v1258
      %v1312 = vmul.f32 %v1100, %v1258
      %v1313 = vmul.f32 %v1102, %v1259
      %v1314 = vmul.f32 %v1104, %v1259
      %v1315 = vmul.f32 %v1106, %v1260
      %v1316 = vmul.f32 %v1108, %v1260
      %v1317 = vmul.f32 %v1110, %v1261
      %v1318 = vmul.f32 %v1112, %v1261
      %v1319 = vmul.f32 %v1114, %v1262
      %v1320 = vmul.f32 %v1116, %v1262
      %v1321 = vmul.f32 %v1118, %v1263
      %v1322 = vmul.f32 %v1120, %v1263
      %v1323 = vmul.f32 %v1122, %v1264
      %v1324 = vmul.f32 %v1124, %v1264
      %v1325 = vmul.f32 %v1126, %v1265
      %v1326 = vmul.f32 %v1128, %v1265
      %v1327 = vmul.f32 %v1130, %v1266
      %v1328 = vmul.f32 %v1132, %v1266
      %v1329 = vmul.f32 %v1134, %v1267
      %v1330 = vmul.f32 %v1136, %v1267
      %v1331 = vmul.f32 %v1138, %v1268
      %v1332 = vmul.f32 %v1140, %v1268
      %v1333 = vpack.c.bf16 %v1271, %v1269
      %v1334 = vpack.c.bf16 %v1272, %v1270
      %v1335 = vpack.c.bf16 %v1275, %v1273
      %v1336 = vpack.c.bf16 %v1276, %v1274
      %v1337 = vpack.c.bf16 %v1279, %v1277
      %v1338 = vpack.c.bf16 %v1280, %v1278
      %v1339 = vpack.c.bf16 %v1283, %v1281
      %v1340 = vpack.c.bf16 %v1284, %v1282
      %v1341 = vpack.c.bf16 %v1287, %v1285
      %v1342 = vpack.c.bf16 %v1288, %v1286
      %v1343 = vpack.c.bf16 %v1291, %v1289
      %v1344 = vpack.c.bf16 %v1292, %v1290
      %v1345 = vpack.c.bf16 %v1295, %v1293
      %v1346 = vpack.c.bf16 %v1296, %v1294
      %v1347 = vpack.c.bf16 %v1299, %v1297
      %v1348 = vpack.c.bf16 %v1300, %v1298
      %v1349 = vpack.c.bf16 %v1303, %v1301
      %v1350 = vpack.c.bf16 %v1304, %v1302
      %v1351 = vpack.c.bf16 %v1307, %v1305
      %v1352 = vpack.c.bf16 %v1308, %v1306
      %v1353 = vpack.c.bf16 %v1311, %v1309
      %v1354 = vpack.c.bf16 %v1312, %v1310
      %v1355 = vpack.c.bf16 %v1315, %v1313
      %v1356 = vpack.c.bf16 %v1316, %v1314
      %v1357 = vpack.c.bf16 %v1319, %v1317
      %v1358 = vpack.c.bf16 %v1320, %v1318
      %v1359 = vpack.c.bf16 %v1323, %v1321
      %v1360 = vpack.c.bf16 %v1324, %v1322
      %v1361 = vpack.c.bf16 %v1327, %v1325
      %v1362 = vpack.c.bf16 %v1328, %v1326
      %v1363 = vpack.c.bf16 %v1331, %v1329
      %v1364 = vpack.c.bf16 %v1332, %v1330
      %v1365 = vld [vmem:[#allocation5] sm:$0x3]
      %v1366 = vadd.f32 %v1269, %v1271
      %v1367 = vadd.f32 %v1366, %v1273
      %v1368 = vadd.f32 %v1367, %v1275
      %v1369 = vadd.f32 %v1368, %v1277
      %v1370 = vadd.f32 %v1369, %v1279
      %v1371 = vadd.f32 %v1370, %v1281
      %v1372 = vadd.f32 %v1371, %v1283
      %v1373 = vadd.f32 %v1372, %v1285
      %v1374 = vadd.f32 %v1373, %v1287
      %v1375 = vadd.f32 %v1374, %v1289
      %v1376 = vadd.f32 %v1375, %v1291
      %v1377 = vadd.f32 %v1376, %v1293
      %v1378 = vadd.f32 %v1377, %v1295
      %v1379 = vadd.f32 %v1378, %v1297
      %v1380 = vadd.f32 %v1379, %v1299
      %v1381 = vadd.f32 %v1380, %v1301
      %v1382 = vadd.f32 %v1381, %v1303
      %v1383 = vadd.f32 %v1382, %v1305
      %v1384 = vadd.f32 %v1383, %v1307
      %v1385 = vadd.f32 %v1384, %v1309
      %v1386 = vadd.f32 %v1385, %v1311
      %v1387 = vadd.f32 %v1386, %v1313
      %v1388 = vadd.f32 %v1387, %v1315
      %v1389 = vadd.f32 %v1388, %v1317
      %v1390 = vadd.f32 %v1389, %v1319
      %v1391 = vadd.f32 %v1390, %v1321
      %v1392 = vadd.f32 %v1391, %v1323
      %v1393 = vadd.f32 %v1392, %v1325
      %v1394 = vadd.f32 %v1393, %v1327
      %v1395 = vadd.f32 %v1394, %v1329
      %v1396 = vadd.f32 %v1395, %v1331
      %v1397 = vrot.slane %v1396, 4
      %v1398 = vadd.f32 %v1396, %v1397
      %v1399 = vrot.slane %v1398, 2
      %v1400 = vadd.f32 %v1398, %v1399
      %v1401 = vrot.slane %v1400, 1
      %v1402 = vadd.f32 %v1400, %v1401
      %v1403 = vadd.f32 %v1270, %v1272
      %v1404 = vadd.f32 %v1403, %v1274
      %v1405 = vadd.f32 %v1404, %v1276
      %v1406 = vadd.f32 %v1405, %v1278
      %v1407 = vadd.f32 %v1406, %v1280
      %v1408 = vadd.f32 %v1407, %v1282
      %v1409 = vadd.f32 %v1408, %v1284
      %v1410 = vadd.f32 %v1409, %v1286
      %v1411 = vadd.f32 %v1410, %v1288
      %v1412 = vadd.f32 %v1411, %v1290
      %v1413 = vadd.f32 %v1412, %v1292
      %v1414 = vadd.f32 %v1413, %v1294
      %v1415 = vadd.f32 %v1414, %v1296
      %v1416 = vadd.f32 %v1415, %v1298
      %v1417 = vadd.f32 %v1416, %v1300
      %v1418 = vadd.f32 %v1417, %v1302
      %v1419 = vadd.f32 %v1418, %v1304
      %v1420 = vadd.f32 %v1419, %v1306
      %v1421 = vadd.f32 %v1420, %v1308
      %v1422 = vadd.f32 %v1421, %v1310
      %v1423 = vadd.f32 %v1422, %v1312
      %v1424 = vadd.f32 %v1423, %v1314
      %v1425 = vadd.f32 %v1424, %v1316
      %v1426 = vadd.f32 %v1425, %v1318
      %v1427 = vadd.f32 %v1426, %v1320
      %v1428 = vadd.f32 %v1427, %v1322
      %v1429 = vadd.f32 %v1428, %v1324
      %v1430 = vadd.f32 %v1429, %v1326
      %v1431 = vadd.f32 %v1430, %v1328
      %v1432 = vadd.f32 %v1431, %v1330
      %v1433 = vadd.f32 %v1432, %v1332
      %v1434 = vrot.slane %v1433, 4
      %v1435 = vadd.f32 %v1433, %v1434
      %v1436 = vrot.slane %v1435, 2
      %v1437 = vadd.f32 %v1435, %v1436
      %v1438 = vrot.slane %v1437, 1
      %v1439 = vadd.f32 %v1437, %v1438
      %v1442 = vcombine.low %v1402, %v1439
      %v1444 = vunpack.c.l.s4 1966171168
      %v1445 = vunpack.c.0.s8 %v1444
      %v1446 = vlaneseq
      %v1447 = vshrl.u32 %v1446, 7
      %v1448 = vsub.s32 %v1445, %v1447
      %v1449 = vrot.slane %v1442, %v1448
      %v1451 = vunpack.c.l.s4 1966171168
      %v1452 = vunpack.c.0.s8 %v1451
      %v1453 = vlaneseq
      %v1454 = vshrl.u32 %v1453, 7
      %v1455 = vsub.s32 %v1452, %v1454
      %v1456 = vrot.slane %v1449, %v1455
      %v1458 = vadd.f32 %v1365, %v1456
      %v1459 = vlaneseq
      %vm1460 = vcmp.ge.s32.totalorder %v1459, 0
      %vm1461 = vcmp.lt.s32.totalorder %v1459, 256
      %vm1462 = vmand %vm1460, %vm1461
      %1463 = vst.msk [vmem:[#allocation5] sm:$0x3] %vm1462, %v1458
      %s1464 = smul.addr %s554, 4
      %s1465 = scalar_lea.vmem [#allocation3], %s1464
      %v1466 = vld [vmem:[%s1465] sm:$0xff]
      %v1467 = vld [vmem:[%s1465 + $0x8] sm:$0xff]
      %v1468 = vld [vmem:[%s1465 + $0x10] sm:$0xff]
      %v1469 = vld [vmem:[%s1465 + $0x18] sm:$0xff]
      %v1470 = vld [vmem:[#allocation4] sm:$0xff]
      %v1471 = vld [vmem:[#allocation4 + $0x8] sm:$0xff]
      %v1472 = vld [vmem:[#allocation4 + $0x10] sm:$0xff]
      %v1473 = vld [vmem:[#allocation4 + $0x18] sm:$0xff]
      %v1474 = vld [vmem:[#allocation4 + $0x20] sm:$0xff]
      %v1475 = vld [vmem:[#allocation4 + $0x28] sm:$0xff]
      %v1476 = vld [vmem:[#allocation4 + $0x30] sm:$0xff]
      %v1477 = vld [vmem:[#allocation4 + $0x38] sm:$0xff]
      %v1482 = vunpack.c.l.b16 %v1466
      %v1483 = vunpack.c.h.b16 %v1466
      %v1484 = vunpack.c.l.b16 %v1467
      %v1485 = vunpack.c.h.b16 %v1467
      %v1486 = vunpack.c.l.b16 %v1468
      %v1487 = vunpack.c.h.b16 %v1468
      %v1488 = vunpack.c.l.b16 %v1469
      %v1489 = vunpack.c.h.b16 %v1469
      %v1490 = vpack.c.b16 %v1484, %v1482
      %v1491 = vpack.c.b16 %v1485, %v1483
      %v1492 = vpack.c.b16 %v1488, %v1486
      %v1493 = vpack.c.b16 %v1489, %v1487
      %1498 = vmatprep.subr.bf16.mxu0 %v1348
      %1499 = vmatpush1.bf16.msra.mxu0 %v1347
      %1500 = vmatprep.subr.bf16.mxu0 %v1346
      %1501 = vmatpush1.bf16.msra.mxu0 %v1345
      %1502 = vmatprep.subr.bf16.mxu0 %v1344
      %1503 = vmatpush1.bf16.msra.mxu0 %v1343
      %1504 = vmatprep.subr.bf16.mxu0 %v1342
      %1505 = vmatpush1.bf16.msra.mxu0 %v1341
      %1506 = vmatprep.subr.bf16.mxu0 %v1340
      %1507 = vmatpush1.bf16.msra.mxu0 %v1339
      %1508 = vmatprep.subr.bf16.mxu0 %v1338
      %1509 = vmatpush1.bf16.msra.mxu0 %v1337
      %1510 = vmatprep.subr.bf16.mxu0 %v1336
      %1511 = vmatpush1.bf16.msra.mxu0 %v1335
      %1512 = vmatprep.subr.bf16.mxu0 %v1334
      %1513 = vmatpush1.bf16.msra.mxu0 %v1333
      %1514 = vmatprep.subr.bf16.mxu0 %v1364
      %1515 = vmatpush2.bf16.msra.mxu0 %v1363
      %1516 = vmatprep.subr.bf16.mxu0 %v1362
      %1517 = vmatpush2.bf16.msra.mxu0 %v1361
      %1518 = vmatprep.subr.bf16.mxu0 %v1360
      %1519 = vmatpush2.bf16.msra.mxu0 %v1359
      %1520 = vmatprep.subr.bf16.mxu0 %v1358
      %1521 = vmatpush2.bf16.msra.mxu0 %v1357
      %1522 = vmatprep.subr.bf16.mxu0 %v1356
      %1523 = vmatpush2.bf16.msra.mxu0 %v1355
      %1524 = vmatprep.subr.bf16.mxu0 %v1354
      %1525 = vmatpush2.bf16.msra.mxu0 %v1353
      %1526 = vmatprep.subr.bf16.mxu0 %v1352
      %1527 = vmatpush2.bf16.msra.mxu0 %v1351
      %1528 = vmatprep.subr.bf16.mxu0 %v1350
      %1529 = vmatpush2.bf16.msra.mxu0 %v1349
      %1530 = vmatprep.mubr.bf16.mxu0 %v1491
      %1531 = vmatmul.mubr.bf16.gmra.mxu0 %v1490
      %v1532 = vpop.f32.mrf.mxu0
      %v1533 = vadd.f32 0.0, %v1532
      %v1534 = vpop.f32.mrf.mxu0
      %v1535 = vadd.f32 0.0, %v1534
      %v1536 = vpop.f32.mrf.mxu0
      %v1537 = vadd.f32 0.0, %v1536
      %v1538 = vpop.f32.mrf.mxu0
      %v1539 = vadd.f32 0.0, %v1538
      %1540 = vmatprep.mubr.bf16.mxu0 %v1493
      %1541 = vmatmul.mubr.bf16.gmra.mxu0 %v1492
      %v1542 = vpop.f32.mrf.mxu0
      %v1543 = vadd.f32 0.0, %v1542
      %v1544 = vpop.f32.mrf.mxu0
      %v1545 = vadd.f32 0.0, %v1544
      %v1546 = vpop.f32.mrf.mxu0
      %v1547 = vadd.f32 0.0, %v1546
      %v1548 = vpop.f32.mrf.mxu0
      %v1549 = vadd.f32 0.0, %v1548
      %1550 = vdwg.mxu0
      %v1551 = vadd.f32 %v1470, %v1533
      %v1552 = vadd.f32 %v1471, %v1535
      %v1553 = vadd.f32 %v1472, %v1537
      %v1554 = vadd.f32 %v1473, %v1539
      %v1555 = vadd.f32 %v1474, %v1543
      %v1556 = vadd.f32 %v1475, %v1545
      %v1557 = vadd.f32 %v1476, %v1547
      %v1558 = vadd.f32 %v1477, %v1549
      %1559 = vst [vmem:[#allocation4] sm:$0xff] %v1551
      %1560 = vst [vmem:[#allocation4 + $0x8] sm:$0xff] %v1552
      %1561 = vst [vmem:[#allocation4 + $0x10] sm:$0xff] %v1553
      %1562 = vst [vmem:[#allocation4 + $0x18] sm:$0xff] %v1554
      %1563 = vst [vmem:[#allocation4 + $0x20] sm:$0xff] %v1555
      %1564 = vst [vmem:[#allocation4 + $0x28] sm:$0xff] %v1556
      %1565 = vst [vmem:[#allocation4 + $0x30] sm:$0xff] %v1557
      %1566 = vst [vmem:[#allocation4 + $0x38] sm:$0xff] %v1558
      // Predicated region
      $region49: #{oa_layer.2} parent=43 // pred_check
        %p1567 = pneg %p344
      $region50: #{oa_layer.2} parent=43 // pred_check_branch
        %1569 = sbr.rel (%p1567) target = $region52
      $region51: #{oa_layer.2} parent=43 // pred_region
        %v1570 = vld [vmem:[#allocation5] sm:$0x3]
        %v1571 = vadd.f32 %v1570, 1e-09
        %v1572 = vrcp.pop %v1571
        %v1573 = vmul.f32 1.0, %v1572
        %v1574 = vld [vmem:[#allocation4] sm:$0xff]
        %v1575 = vld [vmem:[#allocation4 + $0x8] sm:$0xff]
        %v1576 = vld [vmem:[#allocation4 + $0x10] sm:$0xff]
        %v1577 = vld [vmem:[#allocation4 + $0x18] sm:$0xff]
        %v1578 = vld [vmem:[#allocation4 + $0x20] sm:$0xff]
        %v1579 = vld [vmem:[#allocation4 + $0x28] sm:$0xff]
        %v1580 = vld [vmem:[#allocation4 + $0x30] sm:$0xff]
        %v1581 = vld [vmem:[#allocation4 + $0x38] sm:$0xff]
        %v1583 = vlaneseq
        %v1584 = vshrl.u32 %v1583, 7
        %v1585 = vsub.s32 0, %v1584
        %v1586 = vrot.slane %v1573, %v1585
        %v1587 = vlaneseq
        %v1588 = vshrl.u32 %v1587, 7
        %v1589 = vsub.s32 1, %v1588
        %v1590 = vrot.slane %v1573, %v1589
        %v1593 = vmul.f32 %v1574, %v1586
        %v1594 = vmul.f32 %v1575, %v1590
        %v1595 = vmul.f32 %v1576, %v1586
        %v1596 = vmul.f32 %v1577, %v1590
        %v1597 = vmul.f32 %v1578, %v1586
        %v1598 = vmul.f32 %v1579, %v1590
        %v1599 = vmul.f32 %v1580, %v1586
        %v1600 = vmul.f32 %v1581, %v1590
        %v1601 = vld [vmem:[%s327] sm:$0xff]
        %v1602 = vld [vmem:[%s327 + $0x8] sm:$0xff]
        %v1603 = vld [vmem:[%s327 + $0x10] sm:$0xff]
        %v1604 = vld [vmem:[%s327 + $0x18] sm:$0xff]
        %v1605 = vld [vmem:[%s327 + $0x20] sm:$0xff]
        %v1606 = vld [vmem:[%s327 + $0x28] sm:$0xff]
        %v1607 = vld [vmem:[%s327 + $0x30] sm:$0xff]
        %v1608 = vld [vmem:[%s327 + $0x38] sm:$0xff]
        %v1609 = vsub.f32 %v1601, %v1593
        %v1610 = vsub.f32 %v1602, %v1594
        %v1611 = vsub.f32 %v1603, %v1595
        %v1612 = vsub.f32 %v1604, %v1596
        %v1613 = vsub.f32 %v1605, %v1597
        %v1614 = vsub.f32 %v1606, %v1598
        %v1615 = vsub.f32 %v1607, %v1599
        %v1616 = vsub.f32 %v1608, %v1600
        %v1617 = vpack.c.bf16 %v1611, %v1609
        %v1618 = vpack.c.bf16 %v1612, %v1610
        %v1619 = vpack.c.bf16 %v1615, %v1613
        %v1620 = vpack.c.bf16 %v1616, %v1614
        %v1621 = vld [vmem:[%s4] sm:$0xf]
        %v1622 = vld [vmem:[%s4 + $0x4] sm:$0xf]
        %v1623 = vld [vmem:[%s4 + $0x8] sm:$0xf]
        %v1624 = vld [vmem:[%s4 + $0xc] sm:$0xf]
        %v1625 = vld [vmem:[%s5] sm:$0xff]
        %v1626 = vld [vmem:[%s5 + $0x8] sm:$0xff]
        %v1627 = vld [vmem:[%s5 + $0x10] sm:$0xff]
        %v1628 = vld [vmem:[%s5 + $0x18] sm:$0xff]
        %1630 = vset.pattern.permute.xlu0 0
        %1631 = vperm.xlu0 %1630, %v1625
        %v1632 = vpop.permute.xlu0 %1631
        %1635 = vset.pattern.permute.xlu0 0
        %1636 = vperm.xlu0 %1635, %v1626
        %v1637 = vpop.permute.xlu0 %1636
        %1640 = vset.pattern.permute.xlu0 0
        %1641 = vperm.xlu0 %1640, %v1627
        %v1642 = vpop.permute.xlu0 %1641
        %1645 = vset.pattern.permute.xlu0 0
        %1646 = vperm.xlu0 %1645, %v1628
        %v1647 = vpop.permute.xlu0 %1646
        %v1653 = vunpack.c.l.b16 %v1621
        %v1654 = vunpack.c.l.b16 %v1622
        %v1655 = vunpack.c.l.b16 %v1623
        %v1656 = vunpack.c.l.b16 %v1624
        %v1657 = vpack.c.b16 %v1654, %v1653
        %v1658 = vpack.c.b16 %v1656, %v1655
        %vm1659 = vcmask 261120
        %v1661 = vsel %vm1659, %v1657, 0
        %v1664 = vsel %vm1659, %v1658, 0
        %1666 = vmatprep.subr.bf16.mxu0 0
        %1667 = vmatpush1.bf16.msra.mxu0 0
        %1668 = vmatprep.subr.bf16.mxu0 0
        %1669 = vmatpush1.bf16.msra.mxu0 0
        %1670 = vmatprep.subr.bf16.mxu0 0
        %1671 = vmatpush1.bf16.msra.mxu0 0
        %1672 = vmatprep.subr.bf16.mxu0 0
        %1673 = vmatpush1.bf16.msra.mxu0 0
        %1674 = vmatprep.subr.bf16.mxu0 0
        %1675 = vmatpush1.bf16.msra.mxu0 0
        %1676 = vmatprep.subr.bf16.mxu0 0
        %1677 = vmatpush1.bf16.msra.mxu0 0
        %1678 = vmatprep.subr.bf16.mxu0 %v1620
        %1679 = vmatpush1.bf16.msra.mxu0 %v1619
        %1680 = vmatprep.subr.bf16.mxu0 %v1618
        %1681 = vmatpush1.bf16.msra.mxu0 %v1617
        %1682 = vmatprep.subr.bf16.mxu0 0
        %1683 = vmatpush2.bf16.msra.mxu0 0
        %1684 = vmatprep.subr.bf16.mxu0 0
        %1685 = vmatpush2.bf16.msra.mxu0 0
        %1686 = vmatprep.subr.bf16.mxu0 0
        %1687 = vmatpush2.bf16.msra.mxu0 0
        %1688 = vmatprep.subr.bf16.mxu0 0
        %1689 = vmatpush2.bf16.msra.mxu0 0
        %1690 = vmatprep.subr.bf16.mxu0 0
        %1691 = vmatpush2.bf16.msra.mxu0 0
        %1692 = vmatprep.subr.bf16.mxu0 0
        %1693 = vmatpush2.bf16.msra.mxu0 0
        %1694 = vmatprep.subr.bf16.mxu0 0
        %1695 = vmatpush2.bf16.msra.mxu0 0
        %1696 = vmatprep.subr.bf16.mxu0 0
        %1697 = vmatpush2.bf16.msra.mxu0 0
        %1698 = vmatprep.mubr.bf16.mxu0 0
        %1699 = vmatmul.mubr.bf16.gmra.mxu0 %v1661
        %v1700 = vpop.f32.mrf.mxu0
        %v1701 = vadd.f32 %v1632, %v1700
        %v1702 = vpop.f32.mrf.mxu0
        %v1703 = vadd.f32 %v1632, %v1702
        %v1704 = vpop.f32.mrf.mxu0
        %v1705 = vadd.f32 %v1637, %v1704
        %v1706 = vpop.f32.mrf.mxu0
        %v1707 = vadd.f32 %v1637, %v1706
        %1708 = vmatprep.mubr.bf16.mxu0 0
        %1709 = vmatmul.mubr.bf16.gmra.mxu0 %v1664
        %v1710 = vpop.f32.mrf.mxu0
        %v1711 = vadd.f32 %v1642, %v1710
        %v1712 = vpop.f32.mrf.mxu0
        %v1713 = vadd.f32 %v1642, %v1712
        %v1714 = vpop.f32.mrf.mxu0
        %v1715 = vadd.f32 %v1647, %v1714
        %v1716 = vpop.f32.mrf.mxu0
        %v1717 = vadd.f32 %v1647, %v1716
        %1718 = vdwg.mxu0
        %v1719 = vpack.c.bf16 %v1705, %v1701
        %v1720 = vpack.c.bf16 %v1707, %v1703
        %v1721 = vpack.c.bf16 %v1715, %v1711
        %v1722 = vpack.c.bf16 %v1717, %v1713
        %v1727 = vunpack.c.l.b16 %v1719
        %v1728 = vunpack.c.l.b16 %v1720
        %v1729 = vunpack.c.h.b16 %v1719
        %v1730 = vunpack.c.h.b16 %v1720
        %v1731 = vunpack.c.l.b16 %v1721
        %v1732 = vunpack.c.l.b16 %v1722
        %v1733 = vunpack.c.h.b16 %v1721
        %v1734 = vunpack.c.h.b16 %v1722
        %v1735 = vpack.c.b16 %v1728, %v1727
        %v1736 = vpack.c.b16 %v1730, %v1729
        %v1737 = vpack.c.b16 %v1732, %v1731
        %v1738 = vpack.c.b16 %v1734, %v1733
        %1743 = vst [vmem:[%s332] sm:$0xff] %v1735
        %1744 = vst [vmem:[%s332 + $0x8] sm:$0xff] %v1736
        %1745 = vst [vmem:[%s332 + $0x10] sm:$0xff] %v1737
        %1746 = vst [vmem:[%s332 + $0x18] sm:$0xff] %v1738
        %v1747 = vadd.f32 %v1701, %v1703
        %1748 = vadd.xlane.f32.xlu0 %v1747
        %v1749 = vpop.xlane.xlu0 %1748
        %v1750 = vadd.f32 %v1705, %v1707
        %1751 = vadd.xlane.f32.xlu0 %v1750
        %v1752 = vpop.xlane.xlu0 %1751
        %v1753 = vadd.f32 %v1711, %v1713
        %1754 = vadd.xlane.f32.xlu0 %v1753
        %v1755 = vpop.xlane.xlu0 %1754
        %v1756 = vadd.f32 %v1715, %v1717
        %1757 = vadd.xlane.f32.xlu0 %v1756
        %v1758 = vpop.xlane.xlu0 %1757
        %vm1759 = vcmask 7168
        %1760 = vst.msk [vmem:[%s337] sm:$0xff] %vm1759, %v1749
        %1761 = vst.msk [vmem:[%s337 + $0x8] sm:$0xff] %vm1759, %v1752
        %1762 = vst.msk [vmem:[%s337 + $0x10] sm:$0xff] %vm1759, %v1755
        %1763 = vst.msk [vmem:[%s337 + $0x18] sm:$0xff] %vm1759, %v1758
        %v1764 = vmul.f32 %v1701, %v1701
        %v1765 = vmul.f32 %v1703, %v1703
        %v1766 = vmul.f32 %v1705, %v1705
        %v1767 = vmul.f32 %v1707, %v1707
        %v1768 = vmul.f32 %v1711, %v1711
        %v1769 = vmul.f32 %v1713, %v1713
        %v1770 = vmul.f32 %v1715, %v1715
        %v1771 = vmul.f32 %v1717, %v1717
        %v1772 = vadd.f32 %v1764, %v1765
        %1773 = vadd.xlane.f32.xlu0 %v1772
        %v1774 = vpop.xlane.xlu0 %1773
        %v1775 = vadd.f32 %v1766, %v1767
        %1776 = vadd.xlane.f32.xlu0 %v1775
        %v1777 = vpop.xlane.xlu0 %1776
        %v1778 = vadd.f32 %v1768, %v1769
        %1779 = vadd.xlane.f32.xlu0 %v1778
        %v1780 = vpop.xlane.xlu0 %1779
        %v1781 = vadd.f32 %v1770, %v1771
        %1782 = vadd.xlane.f32.xlu0 %v1781
        %v1783 = vpop.xlane.xlu0 %1782
        %1784 = vst.msk [vmem:[%s342] sm:$0xff] %vm1759, %v1774
        %1785 = vst.msk [vmem:[%s342 + $0x8] sm:$0xff] %vm1759, %v1777
        %1786 = vst.msk [vmem:[%s342 + $0x10] sm:$0xff] %vm1759, %v1780
        %1787 = vst.msk [vmem:[%s342 + $0x18] sm:$0xff] %vm1759, %v1783
      $region52: #{oa_layer.2} parent=43 // pred_fallthru
        _
      %p1788 = scmp.lt.s32.totalorder %s24, 1
      %s1789 = scalar_select %p1788, %s24, 1
      %s1790 = smul.addr %s1789, 8
      %s1791 = smul.addr %s1790, 4
      %s1792 = scalar_lea.vmem %s6, %s1791
      %p1793 = scmp.lt.s32.totalorder %s24, 1
      %s1794 = scalar_select %p1793, %s24, 1
      %s1795 = smul.addr %s1794, 4
      %s1796 = smul.addr %s1795, 8
      %s1797 = scalar_lea.vmem %s7, %s1796
      %p1798 = scmp.lt.s32.totalorder %s24, 1
      %s1799 = scalar_select %p1798, %s24, 1
      %s1800 = smul.addr %s1799, 4
      %s1801 = smul.addr %s1800, 8
      %s1802 = scalar_lea.vmem %s8, %s1801
      // Predicated region
      $region53: #{oa_layer.2} parent=43 // pred_check
        %p1803 = pneg %p181
      $region54: #{oa_layer.2} parent=43 // pred_check_branch
        %1805 = sbr.rel (%p1803) target = $region56
      $region55: #{oa_layer.2} parent=43 // pred_region
        _
      $region56: #{oa_layer.2} parent=43 // pred_fallthru
        _
      // Predicated region
      $region57: #{oa_layer.2} parent=43 // pred_check
        %p1806 = pneg %p207
      $region58: #{oa_layer.2} parent=43 // pred_check_branch
        %1808 = sbr.rel (%p1806) target = $region60
      $region59: #{oa_layer.2} parent=43 // pred_region
        _
      $region60: #{oa_layer.2} parent=43 // pred_fallthru
        _
      // Predicated region
      $region61: #{oa_layer.2} parent=43 // pred_check
        %p1809 = pneg %p233
      $region62: #{oa_layer.2} parent=43 // pred_check_branch
        %1811 = sbr.rel (%p1809) target = $region64
      $region63: #{oa_layer.2} parent=43 // pred_region
        _
      $region64: #{oa_layer.2} parent=43 // pred_fallthru
        _
    $region44: #{oa_layer.2} parent=5 // pred_fallthru
      _
    %p1812 = scmp.le.s32.totalorder 2, %s15
    // Predicated region
    $region65: #{oa_layer.2} parent=5 // pred_check
      %p1813 = pneg %p1812
    $region66: #{oa_layer.2} parent=5 // pred_check_branch
      %1815 = sbr.rel (%p1813) target = $region68
    $region67: #{oa_layer.2} parent=5 // pred_region
      %s1816 = ssub.s32 %s15, 2
      // Predicated region
      $region69: #{oa_layer.2} parent=67 // pred_check
        %p1817 = pneg %p187
      $region70: #{oa_layer.2} parent=67 // pred_check_branch
        %1819 = sbr.rel (%p1817) target = $region72
      $region71: #{oa_layer.2} parent=67 // pred_region
        %p1820 = scmp.lt.s32.totalorder %s26, 1
        %s1821 = scalar_select %p1820, %s26, 1
        %s1822 = smul.addr %s1821, 8
        %s1823 = smul.addr %s1822, 4
        %s1824 = scalar_lea.vmem %s6, %s1823
      $region72: #{oa_layer.2} parent=67 // pred_fallthru
        _
      // Predicated region
      $region73: #{oa_layer.2} parent=67 // pred_check
        %p1825 = pneg %p213
      $region74: #{oa_layer.2} parent=67 // pred_check_branch
        %1827 = sbr.rel (%p1825) target = $region76
      $region75: #{oa_layer.2} parent=67 // pred_region
        %p1828 = scmp.lt.s32.totalorder %s26, 1
        %s1829 = scalar_select %p1828, %s26, 1
        %s1830 = smul.addr %s1829, 4
        %s1831 = smul.addr %s1830, 8
        %s1832 = scalar_lea.vmem %s7, %s1831
      $region76: #{oa_layer.2} parent=67 // pred_fallthru
        _
      // Predicated region
      $region77: #{oa_layer.2} parent=67 // pred_check
        %p1833 = pneg %p239
      $region78: #{oa_layer.2} parent=67 // pred_check_branch
        %1835 = sbr.rel (%p1833) target = $region80
      $region79: #{oa_layer.2} parent=67 // pred_region
        %p1836 = scmp.lt.s32.totalorder %s26, 1
        %s1837 = scalar_select %p1836, %s26, 1
        %s1838 = smul.addr %s1837, 4
        %s1839 = smul.addr %s1838, 8
        %s1840 = scalar_lea.vmem %s8, %s1839
      $region80: #{oa_layer.2} parent=67 // pred_fallthru
        _
    $region68: #{oa_layer.2} parent=5 // pred_fallthru
      _
  $region6: #{oa_layer.2} parent=0 // loop_footer
    %s19 = sadd.s32 1, %s15
  $region7: #{oa_layer.2} parent=0 // loop_footer_branch
    %14 = sbr.rel target = $region3
  $region8: #{oa_layer.2} parent=0 // loop_exit
    _

</llo_original>
